<compile_context>
chip_gen: v5e
topology: v5e:2x2
jax: 0.10.0
libtpu: 0.0.40
codegen_flags: <defaults>
</compile_context>

<pallas_src>
import jax
import jax.numpy as jnp
from jax import lax
from jax.experimental import pallas as pl
from jax.experimental.pallas import tpu as pltpu


# -----------------------------------------------------------------------------
# Pallas kernel: in-kernel embedding gather (one-hot MXU matmul against the
# precomputed gx table) + unrolled LSTM recurrence + FC head.
# -----------------------------------------------------------------------------
def lstm_regressor_kernel(tok_ref, gxt_ref, w_hh_ref, fc_w_ref, fc_b_ref,
                          out_ref, gx_ref):
    # tok_ref  : (T*Bp, 1)  int32  time-major, batch-padded token ids (VMEM)
    # gxt_ref  : (Vp, 4H)   f32    emb @ w_ih.T + (b_ih + b_hh), vocab padded
    # w_hh_ref : (H, 4H)    bf16   (PyTorch weight_hh_l0 transposed)
    # fc_w_ref : (1, H)     f32    (fc.weight)
    # fc_b_ref : (1,)       f32    (fc.bias), SMEM scalar
    # out_ref  : (Bp, 128)  f32    lane-dense; real result in column 0
    # gx_ref   : (T*Bp, 4H) f32    VMEM scratch for the hoisted input proj
    Bp, L = out_ref.shape
    TB = tok_ref.shape[0]
    T = TB // Bp
    VP = gxt_ref.shape[0]
    H = w_hh_ref.shape[0]

    # ---- fused embedding gather + input projection (bias folded in) --------
    # one_hot rows select exactly one table row, so the f32 MXU matmul is an
    # exact gather of gx_table[token]; one MXU call covers all timesteps.
    tok = tok_ref[...]                                                 # (TB, 1) i32
    one_hot = (lax.broadcasted_iota(jnp.int32, (TB, VP), 1) == tok
               ).astype(jnp.float32)                                   # (TB, VP)
    gx_ref[...] = jnp.dot(one_hot, gxt_ref[...],
                          preferred_element_type=jnp.float32)          # (TB, 4H) f32

    w_hh = w_hh_ref[...]                                               # bf16, resident

    h = jnp.zeros((Bp, H), jnp.float32)
    c = jnp.zeros((Bp, H), jnp.float32)

    def sig(x):
        # sigmoid(x) = 0.5*tanh(0.5*x)+0.5 : one EUP pass instead of exp+div.
        return 0.5 * jnp.tanh(0.5 * x) + 0.5

    # ---- fully unrolled recurrence (T is a small static trip count) --------
    # Only the dependent h @ w_hh matmul stays on the serial chain; gx comes
    # from the VMEM scratch via static, 8-sublane-aligned slices (Bp = 16) and
    # every gate slice is exactly 128-lane aligned (H == 128).
    for t in range(T):
        g_t = gx_ref[pl.ds(t * Bp, Bp), :]                             # static slice
        gates = g_t + jnp.dot(h.astype(w_hh.dtype), w_hh,
                              preferred_element_type=jnp.float32)      # (Bp, 4H) f32
        i = sig(gates[:, 0:H])
        f = sig(gates[:, H:2 * H])
        g = jnp.tanh(gates[:, 2 * H:3 * H])
        o = sig(gates[:, 3 * H:4 * H])
        c = f * c + i * g
        h = o * jnp.tanh(c)

    # ---- FC head: VPU multiply + XLU lane reduction (no 1-col MXU matmul) --
    y = jnp.sum(h * fc_w_ref[...], axis=-1, keepdims=True) + fc_b_ref[0]  # (Bp, 1)
    out_ref[...] = jnp.broadcast_to(y, (Bp, L))                        # lane-dense store


# -----------------------------------------------------------------------------
# One-time parameter preparation (hoisted out of the per-call forward)
# -----------------------------------------------------------------------------
def prepare_params(params):
    emb = params["embedding"].astype(jnp.float32)            # (V+1, E), row 0 == 0
    V1, _E = emb.shape
    H = params["w_hh"].shape[1]
    VP = max(128, ((V1 + 127) // 128) * 128)                  # lane-pad the vocab

    b = (params["b_ih"] + params["b_hh"]).astype(jnp.float32)           # (4H,)
    # Combined embedding+input-projection table (exact f32): row v is the
    # pre-activation contribution of token v, bias included.
    gx_table = emb @ params["w_ih"].T.astype(jnp.float32) + b           # (V+1, 4H)
    gx_table_p = jnp.zeros((VP, 4 * H), jnp.float32).at[:V1].set(gx_table)

    return {
        "gx_table": gx_table_p,                                          # (VP, 4H) f32
        "w_hh_t": params["w_hh"].T.astype(jnp.bfloat16),                 # (H, 4H) bf16
        "fc_w": params["fc_w"].reshape(1, -1).astype(jnp.float32),       # (1, H)
        "fc_b": params["fc_b"].reshape(1).astype(jnp.float32),           # (1,)
        "hidden_dim": H,
        "vocab_pad": VP,
    }


# -----------------------------------------------------------------------------
# Wrapper (per-call work: pad tokens, launch the fused kernel, slice result)
# -----------------------------------------------------------------------------
def smiles_regressor_forward(tokens, prep):
    """tokens: (B, T) int32 ids in [0, vocab_size]. Returns (B,) f32."""
    B, T = tokens.shape
    H = prep["hidden_dim"]
    VP = prep["vocab_pad"]

    SUBLANES = 16                      # bf16 sublane pack for the h @ w_hh LHS
    Bp = max(SUBLANES, ((B + SUBLANES - 1) // SUBLANES) * SUBLANES)

    # Pad the batch with token id 0 (padding row -> zero embedding).  Padded
    # rows still run the full recurrence (bias-driven nonzero h) but their
    # results are discarded below — wasted work, not masking.
    tokens_p = jnp.zeros((Bp, T), jnp.int32).at[:B].set(tokens.astype(jnp.int32))
    tok_col = tokens_p.T.reshape(T * Bp, 1)                 # time-major, ~0.5 KB

    TB = T * Bp
    flops = 2 * TB * VP * 4 * H + 2 * T * Bp * H * 4 * H + 10 * T * Bp * H
    transcendentals = 5 * T * Bp * H                        # 4 gate tanh + tanh(c)
    bytes_accessed = (TB * 4 + VP * 4 * H * 4 + H * 4 * H * 2
                      + H * 4 + 4 + Bp * 128 * 4)

    out = pl.pallas_call(
        lstm_regressor_kernel,
        out_shape=jax.ShapeDtypeStruct((Bp, 128), jnp.float32),
        in_specs=[
            pl.BlockSpec(memory_space=pltpu.MemorySpace.VMEM),   # token ids
            pl.BlockSpec(memory_space=pltpu.MemorySpace.VMEM),   # gx table
            pl.BlockSpec(memory_space=pltpu.MemorySpace.VMEM),   # w_hh
            pl.BlockSpec(memory_space=pltpu.MemorySpace.VMEM),   # fc_w
            pl.BlockSpec(memory_space=pltpu.MemorySpace.SMEM),   # fc_b scalar
        ],
        out_specs=pl.BlockSpec(memory_space=pltpu.MemorySpace.VMEM),
        scratch_shapes=[pltpu.VMEM((TB, 4 * H), jnp.float32)],   # staged gx
        cost_estimate=pl.CostEstimate(flops=flops,
                                      transcendentals=transcendentals,
                                      bytes_accessed=bytes_accessed),
        compiler_params=pltpu.CompilerParams(vmem_limit_bytes=32 * 1024 * 1024),
    )(tok_col, prep["gx_table"], prep["w_hh_t"], prep["fc_w"], prep["fc_b"])

    return out[:B, 0]                                        # .squeeze(-1)


# -----------------------------------------------------------------------------
# Pure-JAX reference (mirrors the PyTorch forward, all f32) for a sanity check
# -----------------------------------------------------------------------------
def reference_forward(tokens, params):
    x = jnp.take(params["embedding"], tokens, axis=0).astype(jnp.float32)  # (B,T,E)
    H = params["w_hh"].shape[1]
    w_ih_t = params["w_ih"].T
    w_hh_t = params["w_hh"].T
    b = params["b_ih"] + params["b_hh"]

    def step(carry, x_t):
        h, c = carry
        gates = x_t @ w_ih_t + h @ w_hh_t + b
        i = jax.nn.sigmoid(gates[:, 0:H])
        f = jax.nn.sigmoid(gates[:, H:2 * H])
        g = jnp.tanh(gates[:, 2 * H:3 * H])
        o = jax.nn.sigmoid(gates[:, 3 * H:4 * H])
        c = f * c + i * g
        h = o * jnp.tanh(c)
        return (h, c), None

    B = tokens.shape[0]
    h0 = jnp.zeros((B, H), jnp.float32)
    c0 = jnp.zeros((B, H), jnp.float32)
    (h_final, _), _ = lax.scan(step, (h0, c0), jnp.transpose(x, (1, 0, 2)))
    out = h_final @ params["fc_w"].T + params["fc_b"]
    return out[:, 0]


# -----------------------------------------------------------------------------
# Deterministic parameter construction (synthetic, shapes match nn.Module)
# -----------------------------------------------------------------------------
def make_params(key, vocab_size, embed_dim, hidden_dim):
    ks = jax.random.split(key, 7)
    u = lambda k, shape, s: jax.random.uniform(k, shape, jnp.float32, -s, s)
    scale = 1.0 / jnp.sqrt(hidden_dim)
    emb = jax.random.normal(ks[0], (vocab_size + 1, embed_dim), jnp.float32)
    emb = emb.at[0].set(0.0)                        # padding_idx=0
    return {
        "embedding": emb,                                           # (V+1, E)
        "w_ih": u(ks[1], (4 * hidden_dim, embed_dim), scale),       # weight_ih_l0
        "w_hh": u(ks[2], (4 * hidden_dim, hidden_dim), scale),      # weight_hh_l0
        "b_ih": u(ks[3], (4 * hidden_dim,), scale),                 # bias_ih_l0
        "b_hh": u(ks[4], (4 * hidden_dim,), scale),                 # bias_hh_l0
        "fc_w": u(ks[5], (1, hidden_dim), scale),                   # fc.weight
        "fc_b": u(ks[6], (1,), scale),                              # fc.bias
    }


if __name__ == "__main__":
    # nn.Module defaults: embed_dim=64, hidden_dim=128 (H=128 keeps every gate
    # slice exactly 128-lane aligned).
    VOCAB_SIZE = 20
    EMBED_DIM = 64
    HIDDEN_DIM = 128
    B, T = 2, 8

    key = jax.random.PRNGKey(0)
    k_params, k_tok = jax.random.split(key)
    params = make_params(k_params, VOCAB_SIZE, EMBED_DIM, HIDDEN_DIM)
    tokens = jax.random.randint(k_tok, (B, T), 0, VOCAB_SIZE + 1, dtype=jnp.int32)

    prep = prepare_params(params)          # one-time weight preprocessing
    out = smiles_regressor_forward(tokens, prep)
    out = jax.block_until_ready(out)

    ref = reference_forward(tokens, params)
    assert out.shape == (B,)
    # Only the recurrent h @ w_hh operands are bf16 (f32 accumulation, f32
    # carried state); the gather/input projection is exact f32.
    assert jnp.allclose(out, ref, atol=2e-2, rtol=2e-2), (out, ref)

    print("KERNEL_OK")
</pallas_src>

<mosaic_0001>
module attributes {stable_mosaic.version = 11 : i64} {
  func.func @lstm_regressor_kernel(%arg0: memref<128x1xi32, #tpu.memory_space<vmem>>, %arg1: memref<128x512xf32, #tpu.memory_space<vmem>>, %arg2: memref<128x512xbf16, #tpu.memory_space<vmem>>, %arg3: memref<1x128xf32, #tpu.memory_space<vmem>>, %arg4: memref<1xf32, #tpu.memory_space<smem>>, %arg5: memref<16x128xf32, #tpu.memory_space<vmem>>, %arg6: memref<128x512xf32, #tpu.memory_space<vmem>>) attributes {dimension_semantics = [], scalar_prefetch = 0 : i64, scratch_operands = 1 : i64, tpu.core_type = #tpu.core_type<tc>} {
    %c0 = arith.constant 0 : index
    %c0_0 = arith.constant 0 : index
    %0 = vector.load %arg0[%c0, %c0_0] : memref<128x1xi32, #tpu.memory_space<vmem>>, vector<128x1xi32>
    %1 = tpu.iota {dimensions = array<i32: 1>} : vector<128x128xi32>
    %2 = vector.broadcast %0 : vector<128x1xi32> to vector<128x128xi32>
    %3 = arith.cmpi eq, %1, %2 : vector<128x128xi32>
    %4 = arith.extui %3 : vector<128x128xi1> to vector<128x128xi32>
    %5 = arith.sitofp %4 : vector<128x128xi32> to vector<128x128xf32>
    %c0_1 = arith.constant 0 : index
    %c0_2 = arith.constant 0 : index
    %6 = vector.load %arg1[%c0_1, %c0_2] : memref<128x512xf32, #tpu.memory_space<vmem>>, vector<128x512xf32>
    %cst = arith.constant dense<0.000000e+00> : vector<128x512xf32>
    %7 = tpu.matmul %5, %6, %cst {dimension_numbers = #tpu.dot_dimension_numbers<[1], [0], [0], [1], [0, 0, 1, 1], [], []>} : vector<128x128xf32>, vector<128x512xf32>, vector<128x512xf32> -> vector<128x512xf32>
    %c0_3 = arith.constant 0 : index
    %c0_4 = arith.constant 0 : index
    %8 = vector.load %arg6[%c0_3, %c0_4] : memref<128x512xf32, #tpu.memory_space<vmem>>, vector<128x512xf32>
    tpu.vector_store %arg6[%c0_3, %c0_4], %7 {strides = array<i32>} : memref<128x512xf32, #tpu.memory_space<vmem>>, vector<128x512xf32>,
    %c0_5 = arith.constant 0 : index
    %c0_6 = arith.constant 0 : index
    %9 = vector.load %arg2[%c0_5, %c0_6] : memref<128x512xbf16, #tpu.memory_space<vmem>>, vector<128x512xbf16>
    %cst_7 = arith.constant 0.000000e+00 : f32
    %10 = vector.broadcast %cst_7 : f32 to vector<16x128xf32>
    %cst_8 = arith.constant 0.000000e+00 : f32
    %11 = vector.broadcast %cst_8 : f32 to vector<16x128xf32>
    %c0_9 = arith.constant 0 : index
    %c0_10 = arith.constant 0 : index
    %12 = vector.load %arg6[%c0_9, %c0_10] : memref<128x512xf32, #tpu.memory_space<vmem>>, vector<16x512xf32>
    %13 = arith.truncf %10 : vector<16x128xf32> to vector<16x128xbf16>
    %cst_11 = arith.constant dense<0.000000e+00> : vector<16x512xf32>
    %14 = tpu.matmul %13, %9, %cst_11 {dimension_numbers = #tpu.dot_dimension_numbers<[1], [0], [0], [1], [0, 0, 1, 1], [], []>} : vector<16x128xbf16>, vector<128x512xbf16>, vector<16x512xf32> -> vector<16x512xf32>
    %15 = arith.addf %12, %14 : vector<16x512xf32>
    %16 = vector.extract_strided_slice %15 {offsets = [0, 0], sizes = [16, 128], strides = [1, 1]} : vector<16x512xf32> to vector<16x128xf32>
    %cst_12 = arith.constant 5.000000e-01 : f32
    %17 = vector.broadcast %cst_12 : f32 to vector<16x128xf32>
    %18 = arith.mulf %17, %16 : vector<16x128xf32>
    %19 = math.tanh %18 : vector<16x128xf32>
    %cst_13 = arith.constant 5.000000e-01 : f32
    %20 = vector.broadcast %cst_13 : f32 to vector<16x128xf32>
    %21 = arith.mulf %20, %19 : vector<16x128xf32>
    %cst_14 = arith.constant 5.000000e-01 : f32
    %22 = vector.broadcast %cst_14 : f32 to vector<16x128xf32>
    %23 = arith.addf %21, %22 : vector<16x128xf32>
    %24 = vector.extract_strided_slice %15 {offsets = [0, 128], sizes = [16, 128], strides = [1, 1]} : vector<16x512xf32> to vector<16x128xf32>
    %cst_15 = arith.constant 5.000000e-01 : f32
    %25 = vector.broadcast %cst_15 : f32 to vector<16x128xf32>
    %26 = arith.mulf %25, %24 : vector<16x128xf32>
    %27 = math.tanh %26 : vector<16x128xf32>
    %cst_16 = arith.constant 5.000000e-01 : f32
    %28 = vector.broadcast %cst_16 : f32 to vector<16x128xf32>
    %29 = arith.mulf %28, %27 : vector<16x128xf32>
    %cst_17 = arith.constant 5.000000e-01 : f32
    %30 = vector.broadcast %cst_17 : f32 to vector<16x128xf32>
    %31 = arith.addf %29, %30 : vector<16x128xf32>
    %32 = vector.extract_strided_slice %15 {offsets = [0, 256], sizes = [16, 128], strides = [1, 1]} : vector<16x512xf32> to vector<16x128xf32>
    %33 = math.tanh %32 : vector<16x128xf32>
    %34 = vector.extract_strided_slice %15 {offsets = [0, 384], sizes = [16, 128], strides = [1, 1]} : vector<16x512xf32> to vector<16x128xf32>
    %cst_18 = arith.constant 5.000000e-01 : f32
    %35 = vector.broadcast %cst_18 : f32 to vector<16x128xf32>
    %36 = arith.mulf %35, %34 : vector<16x128xf32>
    %37 = math.tanh %36 : vector<16x128xf32>
    %cst_19 = arith.constant 5.000000e-01 : f32
    %38 = vector.broadcast %cst_19 : f32 to vector<16x128xf32>
    %39 = arith.mulf %38, %37 : vector<16x128xf32>
    %cst_20 = arith.constant 5.000000e-01 : f32
    %40 = vector.broadcast %cst_20 : f32 to vector<16x128xf32>
    %41 = arith.addf %39, %40 : vector<16x128xf32>
    %42 = arith.mulf %31, %11 : vector<16x128xf32>
    %43 = arith.mulf %23, %33 : vector<16x128xf32>
    %44 = arith.addf %42, %43 : vector<16x128xf32>
    %45 = math.tanh %44 : vector<16x128xf32>
    %46 = arith.mulf %41, %45 : vector<16x128xf32>
    %c16 = arith.constant 16 : index
    %c0_21 = arith.constant 0 : index
    %47 = vector.load %arg6[%c16, %c0_21] : memref<128x512xf32, #tpu.memory_space<vmem>>, vector<16x512xf32>
    %48 = arith.truncf %46 : vector<16x128xf32> to vector<16x128xbf16>
    %cst_22 = arith.constant dense<0.000000e+00> : vector<16x512xf32>
    %49 = tpu.matmul %48, %9, %cst_22 {dimension_numbers = #tpu.dot_dimension_numbers<[1], [0], [0], [1], [0, 0, 1, 1], [], []>} : vector<16x128xbf16>, vector<128x512xbf16>, vector<16x512xf32> -> vector<16x512xf32>
    %50 = arith.addf %47, %49 : vector<16x512xf32>
    %51 = vector.extract_strided_slice %50 {offsets = [0, 0], sizes = [16, 128], strides = [1, 1]} : vector<16x512xf32> to vector<16x128xf32>
    %cst_23 = arith.constant 5.000000e-01 : f32
    %52 = vector.broadcast %cst_23 : f32 to vector<16x128xf32>
    %53 = arith.mulf %52, %51 : vector<16x128xf32>
    %54 = math.tanh %53 : vector<16x128xf32>
    %cst_24 = arith.constant 5.000000e-01 : f32
    %55 = vector.broadcast %cst_24 : f32 to vector<16x128xf32>
    %56 = arith.mulf %55, %54 : vector<16x128xf32>
    %cst_25 = arith.constant 5.000000e-01 : f32
    %57 = vector.broadcast %cst_25 : f32 to vector<16x128xf32>
    %58 = arith.addf %56, %57 : vector<16x128xf32>
    %59 = vector.extract_strided_slice %50 {offsets = [0, 128], sizes = [16, 128], strides = [1, 1]} : vector<16x512xf32> to vector<16x128xf32>
    %cst_26 = arith.constant 5.000000e-01 : f32
    %60 = vector.broadcast %cst_26 : f32 to vector<16x128xf32>
    %61 = arith.mulf %60, %59 : vector<16x128xf32>
    %62 = math.tanh %61 : vector<16x128xf32>
    %cst_27 = arith.constant 5.000000e-01 : f32
    %63 = vector.broadcast %cst_27 : f32 to vector<16x128xf32>
    %64 = arith.mulf %63, %62 : vector<16x128xf32>
    %cst_28 = arith.constant 5.000000e-01 : f32
    %65 = vector.broadcast %cst_28 : f32 to vector<16x128xf32>
    %66 = arith.addf %64, %65 : vector<16x128xf32>
    %67 = vector.extract_strided_slice %50 {offsets = [0, 256], sizes = [16, 128], strides = [1, 1]} : vector<16x512xf32> to vector<16x128xf32>
    %68 = math.tanh %67 : vector<16x128xf32>
    %69 = vector.extract_strided_slice %50 {offsets = [0, 384], sizes = [16, 128], strides = [1, 1]} : vector<16x512xf32> to vector<16x128xf32>
    %cst_29 = arith.constant 5.000000e-01 : f32
    %70 = vector.broadcast %cst_29 : f32 to vector<16x128xf32>
    %71 = arith.mulf %70, %69 : vector<16x128xf32>
    %72 = math.tanh %71 : vector<16x128xf32>
    %cst_30 = arith.constant 5.000000e-01 : f32
    %73 = vector.broadcast %cst_30 : f32 to vector<16x128xf32>
    %74 = arith.mulf %73, %72 : vector<16x128xf32>
    %cst_31 = arith.constant 5.000000e-01 : f32
    %75 = vector.broadcast %cst_31 : f32 to vector<16x128xf32>
    %76 = arith.addf %74, %75 : vector<16x128xf32>
    %77 = arith.mulf %66, %44 : vector<16x128xf32>
    %78 = arith.mulf %58, %68 : vector<16x128xf32>
    %79 = arith.addf %77, %78 : vector<16x128xf32>
    %80 = math.tanh %79 : vector<16x128xf32>
    %81 = arith.mulf %76, %80 : vector<16x128xf32>
    %c32 = arith.constant 32 : index
    %c0_32 = arith.constant 0 : index
    %82 = vector.load %arg6[%c32, %c0_32] : memref<128x512xf32, #tpu.memory_space<vmem>>, vector<16x512xf32>
    %83 = arith.truncf %81 : vector<16x128xf32> to vector<16x128xbf16>
    %cst_33 = arith.constant dense<0.000000e+00> : vector<16x512xf32>
    %84 = tpu.matmul %83, %9, %cst_33 {dimension_numbers = #tpu.dot_dimension_numbers<[1], [0], [0], [1], [0, 0, 1, 1], [], []>} : vector<16x128xbf16>, vector<128x512xbf16>, vector<16x512xf32> -> vector<16x512xf32>
    %85 = arith.addf %82, %84 : vector<16x512xf32>
    %86 = vector.extract_strided_slice %85 {offsets = [0, 0], sizes = [16, 128], strides = [1, 1]} : vector<16x512xf32> to vector<16x128xf32>
    %cst_34 = arith.constant 5.000000e-01 : f32
    %87 = vector.broadcast %cst_34 : f32 to vector<16x128xf32>
    %88 = arith.mulf %87, %86 : vector<16x128xf32>
    %89 = math.tanh %88 : vector<16x128xf32>
    %cst_35 = arith.constant 5.000000e-01 : f32
    %90 = vector.broadcast %cst_35 : f32 to vector<16x128xf32>
    %91 = arith.mulf %90, %89 : vector<16x128xf32>
    %cst_36 = arith.constant 5.000000e-01 : f32
    %92 = vector.broadcast %cst_36 : f32 to vector<16x128xf32>
    %93 = arith.addf %91, %92 : vector<16x128xf32>
    %94 = vector.extract_strided_slice %85 {offsets = [0, 128], sizes = [16, 128], strides = [1, 1]} : vector<16x512xf32> to vector<16x128xf32>
    %cst_37 = arith.constant 5.000000e-01 : f32
    %95 = vector.broadcast %cst_37 : f32 to vector<16x128xf32>
    %96 = arith.mulf %95, %94 : vector<16x128xf32>
    %97 = math.tanh %96 : vector<16x128xf32>
    %cst_38 = arith.constant 5.000000e-01 : f32
    %98 = vector.broadcast %cst_38 : f32 to vector<16x128xf32>
    %99 = arith.mulf %98, %97 : vector<16x128xf32>
    %cst_39 = arith.constant 5.000000e-01 : f32
    %100 = vector.broadcast %cst_39 : f32 to vector<16x128xf32>
    %101 = arith.addf %99, %100 : vector<16x128xf32>
    %102 = vector.extract_strided_slice %85 {offsets = [0, 256], sizes = [16, 128], strides = [1, 1]} : vector<16x512xf32> to vector<16x128xf32>
    %103 = math.tanh %102 : vector<16x128xf32>
    %104 = vector.extract_strided_slice %85 {offsets = [0, 384], sizes = [16, 128], strides = [1, 1]} : vector<16x512xf32> to vector<16x128xf32>
    %cst_40 = arith.constant 5.000000e-01 : f32
    %105 = vector.broadcast %cst_40 : f32 to vector<16x128xf32>
    %106 = arith.mulf %105, %104 : vector<16x128xf32>
    %107 = math.tanh %106 : vector<16x128xf32>
    %cst_41 = arith.constant 5.000000e-01 : f32
    %108 = vector.broadcast %cst_41 : f32 to vector<16x128xf32>
    %109 = arith.mulf %108, %107 : vector<16x128xf32>
    %cst_42 = arith.constant 5.000000e-01 : f32
    %110 = vector.broadcast %cst_42 : f32 to vector<16x128xf32>
    %111 = arith.addf %109, %110 : vector<16x128xf32>
    %112 = arith.mulf %101, %79 : vector<16x128xf32>
    %113 = arith.mulf %93, %103 : vector<16x128xf32>
    %114 = arith.addf %112, %113 : vector<16x128xf32>
    %115 = math.tanh %114 : vector<16x128xf32>
    %116 = arith.mulf %111, %115 : vector<16x128xf32>
    %c48 = arith.constant 48 : index
    %c0_43 = arith.constant 0 : index
    %117 = vector.load %arg6[%c48, %c0_43] : memref<128x512xf32, #tpu.memory_space<vmem>>, vector<16x512xf32>
    %118 = arith.truncf %116 : vector<16x128xf32> to vector<16x128xbf16>
    %cst_44 = arith.constant dense<0.000000e+00> : vector<16x512xf32>
    %119 = tpu.matmul %118, %9, %cst_44 {dimension_numbers = #tpu.dot_dimension_numbers<[1], [0], [0], [1], [0, 0, 1, 1], [], []>} : vector<16x128xbf16>, vector<128x512xbf16>, vector<16x512xf32> -> vector<16x512xf32>
    %120 = arith.addf %117, %119 : vector<16x512xf32>
    %121 = vector.extract_strided_slice %120 {offsets = [0, 0], sizes = [16, 128], strides = [1, 1]} : vector<16x512xf32> to vector<16x128xf32>
    %cst_45 = arith.constant 5.000000e-01 : f32
    %122 = vector.broadcast %cst_45 : f32 to vector<16x128xf32>
    %123 = arith.mulf %122, %121 : vector<16x128xf32>
    %124 = math.tanh %123 : vector<16x128xf32>
    %cst_46 = arith.constant 5.000000e-01 : f32
    %125 = vector.broadcast %cst_46 : f32 to vector<16x128xf32>
    %126 = arith.mulf %125, %124 : vector<16x128xf32>
    %cst_47 = arith.constant 5.000000e-01 : f32
    %127 = vector.broadcast %cst_47 : f32 to vector<16x128xf32>
    %128 = arith.addf %126, %127 : vector<16x128xf32>
    %129 = vector.extract_strided_slice %120 {offsets = [0, 128], sizes = [16, 128], strides = [1, 1]} : vector<16x512xf32> to vector<16x128xf32>
    %cst_48 = arith.constant 5.000000e-01 : f32
    %130 = vector.broadcast %cst_48 : f32 to vector<16x128xf32>
    %131 = arith.mulf %130, %129 : vector<16x128xf32>
    %132 = math.tanh %131 : vector<16x128xf32>
    %cst_49 = arith.constant 5.000000e-01 : f32
    %133 = vector.broadcast %cst_49 : f32 to vector<16x128xf32>
    %134 = arith.mulf %133, %132 : vector<16x128xf32>
    %cst_50 = arith.constant 5.000000e-01 : f32
    %135 = vector.broadcast %cst_50 : f32 to vector<16x128xf32>
    %136 = arith.addf %134, %135 : vector<16x128xf32>
    %137 = vector.extract_strided_slice %120 {offsets = [0, 256], sizes = [16, 128], strides = [1, 1]} : vector<16x512xf32> to vector<16x128xf32>
    %138 = math.tanh %137 : vector<16x128xf32>
    %139 = vector.extract_strided_slice %120 {offsets = [0, 384], sizes = [16, 128], strides = [1, 1]} : vector<16x512xf32> to vector<16x128xf32>
    %cst_51 = arith.constant 5.000000e-01 : f32
    %140 = vector.broadcast %cst_51 : f32 to vector<16x128xf32>
    %141 = arith.mulf %140, %139 : vector<16x128xf32>
    %142 = math.tanh %141 : vector<16x128xf32>
    %cst_52 = arith.constant 5.000000e-01 : f32
    %143 = vector.broadcast %cst_52 : f32 to vector<16x128xf32>
    %144 = arith.mulf %143, %142 : vector<16x128xf32>
    %cst_53 = arith.constant 5.000000e-01 : f32
    %145 = vector.broadcast %cst_53 : f32 to vector<16x128xf32>
    %146 = arith.addf %144, %145 : vector<16x128xf32>
    %147 = arith.mulf %136, %114 : vector<16x128xf32>
    %148 = arith.mulf %128, %138 : vector<16x128xf32>
    %149 = arith.addf %147, %148 : vector<16x128xf32>
    %150 = math.tanh %149 : vector<16x128xf32>
    %151 = arith.mulf %146, %150 : vector<16x128xf32>
    %c64 = arith.constant 64 : index
    %c0_54 = arith.constant 0 : index
    %152 = vector.load %arg6[%c64, %c0_54] : memref<128x512xf32, #tpu.memory_space<vmem>>, vector<16x512xf32>
    %153 = arith.truncf %151 : vector<16x128xf32> to vector<16x128xbf16>
    %cst_55 = arith.constant dense<0.000000e+00> : vector<16x512xf32>
    %154 = tpu.matmul %153, %9, %cst_55 {dimension_numbers = #tpu.dot_dimension_numbers<[1], [0], [0], [1], [0, 0, 1, 1], [], []>} : vector<16x128xbf16>, vector<128x512xbf16>, vector<16x512xf32> -> vector<16x512xf32>
    %155 = arith.addf %152, %154 : vector<16x512xf32>
    %156 = vector.extract_strided_slice %155 {offsets = [0, 0], sizes = [16, 128], strides = [1, 1]} : vector<16x512xf32> to vector<16x128xf32>
    %cst_56 = arith.constant 5.000000e-01 : f32
    %157 = vector.broadcast %cst_56 : f32 to vector<16x128xf32>
    %158 = arith.mulf %157, %156 : vector<16x128xf32>
    %159 = math.tanh %158 : vector<16x128xf32>
    %cst_57 = arith.constant 5.000000e-01 : f32
    %160 = vector.broadcast %cst_57 : f32 to vector<16x128xf32>
    %161 = arith.mulf %160, %159 : vector<16x128xf32>
    %cst_58 = arith.constant 5.000000e-01 : f32
    %162 = vector.broadcast %cst_58 : f32 to vector<16x128xf32>
    %163 = arith.addf %161, %162 : vector<16x128xf32>
    %164 = vector.extract_strided_slice %155 {offsets = [0, 128], sizes = [16, 128], strides = [1, 1]} : vector<16x512xf32> to vector<16x128xf32>
    %cst_59 = arith.constant 5.000000e-01 : f32
    %165 = vector.broadcast %cst_59 : f32 to vector<16x128xf32>
    %166 = arith.mulf %165, %164 : vector<16x128xf32>
    %167 = math.tanh %166 : vector<16x128xf32>
    %cst_60 = arith.constant 5.000000e-01 : f32
    %168 = vector.broadcast %cst_60 : f32 to vector<16x128xf32>
    %169 = arith.mulf %168, %167 : vector<16x128xf32>
    %cst_61 = arith.constant 5.000000e-01 : f32
    %170 = vector.broadcast %cst_61 : f32 to vector<16x128xf32>
    %171 = arith.addf %169, %170 : vector<16x128xf32>
    %172 = vector.extract_strided_slice %155 {offsets = [0, 256], sizes = [16, 128], strides = [1, 1]} : vector<16x512xf32> to vector<16x128xf32>
    %173 = math.tanh %172 : vector<16x128xf32>
    %174 = vector.extract_strided_slice %155 {offsets = [0, 384], sizes = [16, 128], strides = [1, 1]} : vector<16x512xf32> to vector<16x128xf32>
    %cst_62 = arith.constant 5.000000e-01 : f32
    %175 = vector.broadcast %cst_62 : f32 to vector<16x128xf32>
    %176 = arith.mulf %175, %174 : vector<16x128xf32>
    %177 = math.tanh %176 : vector<16x128xf32>
    %cst_63 = arith.constant 5.000000e-01 : f32
    %178 = vector.broadcast %cst_63 : f32 to vector<16x128xf32>
    %179 = arith.mulf %178, %177 : vector<16x128xf32>
    %cst_64 = arith.constant 5.000000e-01 : f32
    %180 = vector.broadcast %cst_64 : f32 to vector<16x128xf32>
    %181 = arith.addf %179, %180 : vector<16x128xf32>
    %182 = arith.mulf %171, %149 : vector<16x128xf32>
    %183 = arith.mulf %163, %173 : vector<16x128xf32>
    %184 = arith.addf %182, %183 : vector<16x128xf32>
    %185 = math.tanh %184 : vector<16x128xf32>
    %186 = arith.mulf %181, %185 : vector<16x128xf32>
    %c80 = arith.constant 80 : index
    %c0_65 = arith.constant 0 : index
    %187 = vector.load %arg6[%c80, %c0_65] : memref<128x512xf32, #tpu.memory_space<vmem>>, vector<16x512xf32>
    %188 = arith.truncf %186 : vector<16x128xf32> to vector<16x128xbf16>
    %cst_66 = arith.constant dense<0.000000e+00> : vector<16x512xf32>
    %189 = tpu.matmul %188, %9, %cst_66 {dimension_numbers = #tpu.dot_dimension_numbers<[1], [0], [0], [1], [0, 0, 1, 1], [], []>} : vector<16x128xbf16>, vector<128x512xbf16>, vector<16x512xf32> -> vector<16x512xf32>
    %190 = arith.addf %187, %189 : vector<16x512xf32>
    %191 = vector.extract_strided_slice %190 {offsets = [0, 0], sizes = [16, 128], strides = [1, 1]} : vector<16x512xf32> to vector<16x128xf32>
    %cst_67 = arith.constant 5.000000e-01 : f32
    %192 = vector.broadcast %cst_67 : f32 to vector<16x128xf32>
    %193 = arith.mulf %192, %191 : vector<16x128xf32>
    %194 = math.tanh %193 : vector<16x128xf32>
    %cst_68 = arith.constant 5.000000e-01 : f32
    %195 = vector.broadcast %cst_68 : f32 to vector<16x128xf32>
    %196 = arith.mulf %195, %194 : vector<16x128xf32>
    %cst_69 = arith.constant 5.000000e-01 : f32
    %197 = vector.broadcast %cst_69 : f32 to vector<16x128xf32>
    %198 = arith.addf %196, %197 : vector<16x128xf32>
    %199 = vector.extract_strided_slice %190 {offsets = [0, 128], sizes = [16, 128], strides = [1, 1]} : vector<16x512xf32> to vector<16x128xf32>
    %cst_70 = arith.constant 5.000000e-01 : f32
    %200 = vector.broadcast %cst_70 : f32 to vector<16x128xf32>
    %201 = arith.mulf %200, %199 : vector<16x128xf32>
    %202 = math.tanh %201 : vector<16x128xf32>
    %cst_71 = arith.constant 5.000000e-01 : f32
    %203 = vector.broadcast %cst_71 : f32 to vector<16x128xf32>
    %204 = arith.mulf %203, %202 : vector<16x128xf32>
    %cst_72 = arith.constant 5.000000e-01 : f32
    %205 = vector.broadcast %cst_72 : f32 to vector<16x128xf32>
    %206 = arith.addf %204, %205 : vector<16x128xf32>
    %207 = vector.extract_strided_slice %190 {offsets = [0, 256], sizes = [16, 128], strides = [1, 1]} : vector<16x512xf32> to vector<16x128xf32>
    %208 = math.tanh %207 : vector<16x128xf32>
    %209 = vector.extract_strided_slice %190 {offsets = [0, 384], sizes = [16, 128], strides = [1, 1]} : vector<16x512xf32> to vector<16x128xf32>
    %cst_73 = arith.constant 5.000000e-01 : f32
    %210 = vector.broadcast %cst_73 : f32 to vector<16x128xf32>
    %211 = arith.mulf %210, %209 : vector<16x128xf32>
    %212 = math.tanh %211 : vector<16x128xf32>
    %cst_74 = arith.constant 5.000000e-01 : f32
    %213 = vector.broadcast %cst_74 : f32 to vector<16x128xf32>
    %214 = arith.mulf %213, %212 : vector<16x128xf32>
    %cst_75 = arith.constant 5.000000e-01 : f32
    %215 = vector.broadcast %cst_75 : f32 to vector<16x128xf32>
    %216 = arith.addf %214, %215 : vector<16x128xf32>
    %217 = arith.mulf %206, %184 : vector<16x128xf32>
    %218 = arith.mulf %198, %208 : vector<16x128xf32>
    %219 = arith.addf %217, %218 : vector<16x128xf32>
    %220 = math.tanh %219 : vector<16x128xf32>
    %221 = arith.mulf %216, %220 : vector<16x128xf32>
    %c96 = arith.constant 96 : index
    %c0_76 = arith.constant 0 : index
    %222 = vector.load %arg6[%c96, %c0_76] : memref<128x512xf32, #tpu.memory_space<vmem>>, vector<16x512xf32>
    %223 = arith.truncf %221 : vector<16x128xf32> to vector<16x128xbf16>
    %cst_77 = arith.constant dense<0.000000e+00> : vector<16x512xf32>
    %224 = tpu.matmul %223, %9, %cst_77 {dimension_numbers = #tpu.dot_dimension_numbers<[1], [0], [0], [1], [0, 0, 1, 1], [], []>} : vector<16x128xbf16>, vector<128x512xbf16>, vector<16x512xf32> -> vector<16x512xf32>
    %225 = arith.addf %222, %224 : vector<16x512xf32>
    %226 = vector.extract_strided_slice %225 {offsets = [0, 0], sizes = [16, 128], strides = [1, 1]} : vector<16x512xf32> to vector<16x128xf32>
    %cst_78 = arith.constant 5.000000e-01 : f32
    %227 = vector.broadcast %cst_78 : f32 to vector<16x128xf32>
    %228 = arith.mulf %227, %226 : vector<16x128xf32>
    %229 = math.tanh %228 : vector<16x128xf32>
    %cst_79 = arith.constant 5.000000e-01 : f32
    %230 = vector.broadcast %cst_79 : f32 to vector<16x128xf32>
    %231 = arith.mulf %230, %229 : vector<16x128xf32>
    %cst_80 = arith.constant 5.000000e-01 : f32
    %232 = vector.broadcast %cst_80 : f32 to vector<16x128xf32>
    %233 = arith.addf %231, %232 : vector<16x128xf32>
    %234 = vector.extract_strided_slice %225 {offsets = [0, 128], sizes = [16, 128], strides = [1, 1]} : vector<16x512xf32> to vector<16x128xf32>
    %cst_81 = arith.constant 5.000000e-01 : f32
    %235 = vector.broadcast %cst_81 : f32 to vector<16x128xf32>
    %236 = arith.mulf %235, %234 : vector<16x128xf32>
    %237 = math.tanh %236 : vector<16x128xf32>
    %cst_82 = arith.constant 5.000000e-01 : f32
    %238 = vector.broadcast %cst_82 : f32 to vector<16x128xf32>
    %239 = arith.mulf %238, %237 : vector<16x128xf32>
    %cst_83 = arith.constant 5.000000e-01 : f32
    %240 = vector.broadcast %cst_83 : f32 to vector<16x128xf32>
    %241 = arith.addf %239, %240 : vector<16x128xf32>
    %242 = vector.extract_strided_slice %225 {offsets = [0, 256], sizes = [16, 128], strides = [1, 1]} : vector<16x512xf32> to vector<16x128xf32>
    %243 = math.tanh %242 : vector<16x128xf32>
    %244 = vector.extract_strided_slice %225 {offsets = [0, 384], sizes = [16, 128], strides = [1, 1]} : vector<16x512xf32> to vector<16x128xf32>
    %cst_84 = arith.constant 5.000000e-01 : f32
    %245 = vector.broadcast %cst_84 : f32 to vector<16x128xf32>
    %246 = arith.mulf %245, %244 : vector<16x128xf32>
    %247 = math.tanh %246 : vector<16x128xf32>
    %cst_85 = arith.constant 5.000000e-01 : f32
    %248 = vector.broadcast %cst_85 : f32 to vector<16x128xf32>
    %249 = arith.mulf %248, %247 : vector<16x128xf32>
    %cst_86 = arith.constant 5.000000e-01 : f32
    %250 = vector.broadcast %cst_86 : f32 to vector<16x128xf32>
    %251 = arith.addf %249, %250 : vector<16x128xf32>
    %252 = arith.mulf %241, %219 : vector<16x128xf32>
    %253 = arith.mulf %233, %243 : vector<16x128xf32>
    %254 = arith.addf %252, %253 : vector<16x128xf32>
    %255 = math.tanh %254 : vector<16x128xf32>
    %256 = arith.mulf %251, %255 : vector<16x128xf32>
    %c112 = arith.constant 112 : index
    %c0_87 = arith.constant 0 : index
    %257 = vector.load %arg6[%c112, %c0_87] : memref<128x512xf32, #tpu.memory_space<vmem>>, vector<16x512xf32>
    %258 = arith.truncf %256 : vector<16x128xf32> to vector<16x128xbf16>
    %cst_88 = arith.constant dense<0.000000e+00> : vector<16x512xf32>
    %259 = tpu.matmul %258, %9, %cst_88 {dimension_numbers = #tpu.dot_dimension_numbers<[1], [0], [0], [1], [0, 0, 1, 1], [], []>} : vector<16x128xbf16>, vector<128x512xbf16>, vector<16x512xf32> -> vector<16x512xf32>
    %260 = arith.addf %257, %259 : vector<16x512xf32>
    %261 = vector.extract_strided_slice %260 {offsets = [0, 0], sizes = [16, 128], strides = [1, 1]} : vector<16x512xf32> to vector<16x128xf32>
    %cst_89 = arith.constant 5.000000e-01 : f32
    %262 = vector.broadcast %cst_89 : f32 to vector<16x128xf32>
    %263 = arith.mulf %262, %261 : vector<16x128xf32>
    %264 = math.tanh %263 : vector<16x128xf32>
    %cst_90 = arith.constant 5.000000e-01 : f32
    %265 = vector.broadcast %cst_90 : f32 to vector<16x128xf32>
    %266 = arith.mulf %265, %264 : vector<16x128xf32>
    %cst_91 = arith.constant 5.000000e-01 : f32
    %267 = vector.broadcast %cst_91 : f32 to vector<16x128xf32>
    %268 = arith.addf %266, %267 : vector<16x128xf32>
    %269 = vector.extract_strided_slice %260 {offsets = [0, 128], sizes = [16, 128], strides = [1, 1]} : vector<16x512xf32> to vector<16x128xf32>
    %cst_92 = arith.constant 5.000000e-01 : f32
    %270 = vector.broadcast %cst_92 : f32 to vector<16x128xf32>
    %271 = arith.mulf %270, %269 : vector<16x128xf32>
    %272 = math.tanh %271 : vector<16x128xf32>
    %cst_93 = arith.constant 5.000000e-01 : f32
    %273 = vector.broadcast %cst_93 : f32 to vector<16x128xf32>
    %274 = arith.mulf %273, %272 : vector<16x128xf32>
    %cst_94 = arith.constant 5.000000e-01 : f32
    %275 = vector.broadcast %cst_94 : f32 to vector<16x128xf32>
    %276 = arith.addf %274, %275 : vector<16x128xf32>
    %277 = vector.extract_strided_slice %260 {offsets = [0, 256], sizes = [16, 128], strides = [1, 1]} : vector<16x512xf32> to vector<16x128xf32>
    %278 = math.tanh %277 : vector<16x128xf32>
    %279 = vector.extract_strided_slice %260 {offsets = [0, 384], sizes = [16, 128], strides = [1, 1]} : vector<16x512xf32> to vector<16x128xf32>
    %cst_95 = arith.constant 5.000000e-01 : f32
    %280 = vector.broadcast %cst_95 : f32 to vector<16x128xf32>
    %281 = arith.mulf %280, %279 : vector<16x128xf32>
    %282 = math.tanh %281 : vector<16x128xf32>
    %cst_96 = arith.constant 5.000000e-01 : f32
    %283 = vector.broadcast %cst_96 : f32 to vector<16x128xf32>
    %284 = arith.mulf %283, %282 : vector<16x128xf32>
    %cst_97 = arith.constant 5.000000e-01 : f32
    %285 = vector.broadcast %cst_97 : f32 to vector<16x128xf32>
    %286 = arith.addf %284, %285 : vector<16x128xf32>
    %287 = arith.mulf %276, %254 : vector<16x128xf32>
    %288 = arith.mulf %268, %278 : vector<16x128xf32>
    %289 = arith.addf %287, %288 : vector<16x128xf32>
    %290 = math.tanh %289 : vector<16x128xf32>
    %291 = arith.mulf %286, %290 : vector<16x128xf32>
    %c0_98 = arith.constant 0 : index
    %c0_99 = arith.constant 0 : index
    %292 = vector.load %arg3[%c0_98, %c0_99] : memref<1x128xf32, #tpu.memory_space<vmem>>, vector<1x128xf32>
    %293 = vector.broadcast %292 : vector<1x128xf32> to vector<16x128xf32>
    %294 = arith.mulf %291, %293 : vector<16x128xf32>
    %cst_100 = arith.constant dense<0.000000e+00> : vector<16xf32>
    %295 = vector.multi_reduction <add>, %294, %cst_100 [1] : vector<16x128xf32> to vector<16xf32>
    %296 = vector.shape_cast %295 : vector<16xf32> to vector<16x1xf32>
    %c0_101 = arith.constant 0 : index
    %297 = memref.load %arg4[%c0_101] : memref<1xf32, #tpu.memory_space<smem>>
    %298 = vector.broadcast %297 : f32 to vector<16x1xf32>
    %299 = arith.addf %296, %298 : vector<16x1xf32>
    %300 = vector.shape_cast %299 : vector<16x1xf32> to vector<16x1xf32>
    %301 = vector.broadcast %300 : vector<16x1xf32> to vector<16x128xf32>
    %c0_102 = arith.constant 0 : index
    %c0_103 = arith.constant 0 : index
    %302 = vector.load %arg5[%c0_102, %c0_103] : memref<16x128xf32, #tpu.memory_space<vmem>>, vector<16x128xf32>
    tpu.vector_store %arg5[%c0_102, %c0_103], %301 {strides = array<i32>} : memref<16x128xf32, #tpu.memory_space<vmem>>, vector<16x128xf32>,
    return
  }
}

</mosaic_0001>

<llo_original>
// kernel: tpu_custom_call.1
$region0: #{tpu_custom_call.1}
  #allocation0 [shape = 'u32[]', space=smem, size = 0x4, offset = 0x4, fixed_abs, tag = 'smem constant byte address 0x4 - core index']
  #allocation1 [shape = 'u32[72,128]{1,0:T(1,128)}', space=vmem, size = 0x9000, scoped, tag = 'internal scratch']
  #allocation2 [shape = 'f32[128,512]{1,0:T(8,128)}', space=vmem, size = 0x40000, scoped, tag = 'scratch operand']
  #allocation3 [shape = 'f32[1]{0:T(128)S(6)}', space=smem, size = 0x200, scoped, tag = 'scoped memory for tpu_custom_call.1']
  %s0 = inlined_call_operand.vmem [shape: s32[128,1], index: 0, kind: input, shape index: {}]
  %s1 = inlined_call_operand.hbm [shape: f32[128,512], index: 1, kind: input, shape index: {}]
  %s2 = inlined_call_operand.hbm [shape: bf16[128,512], index: 2, kind: input, shape index: {}]
  %s3 = inlined_call_operand.vmem [shape: f32[1,128], index: 3, kind: input, shape index: {}]
  %s4 = inlined_call_operand.<no memory space> [shape: f32[1], index: 4, kind: input, shape index: {}]
  %s5 = inlined_call_operand.hbm [shape: f32[16,128], index: 5, kind: output, shape index: {}]
  %s6 = sld [smem:[#allocation0]]
  $region38: #{tpu_custom_call.1} parent=0
    _
  %s8 = ssub.s32 1, %s6
  %s9 = scalar_select 0, %s8, %s6
  %10 = sst [smem:[#allocation3]] %s4
  $region1: #{tpu_custom_call.1} parent=0
    #allocation4 [shape = 'u8[262144]{0}', space=vmem, size = 0x40000, scoped, tag = 'input window, operand 1, single buffered']
    #allocation5 [shape = 's32[1]{0}', space=sflag, size = 0x4, scoped, tag = 'scoped memory for tpu_custom_call.1']
    #allocation6 [shape = 's32[1]{0}', space=sflag, size = 0x4, scoped, tag = 'scoped memory for tpu_custom_call.1']
    #allocation7 [shape = 'u8[131072]{0}', space=vmem, size = 0x20000, scoped, tag = 'input window, operand 2, single buffered']
    #allocation8 [shape = 's32[1]{0}', space=sflag, size = 0x4, scoped, tag = 'scoped memory for tpu_custom_call.1']
    #allocation9 [shape = 'u8[8192]{0}', space=vmem, size = 0x2000, scoped, tag = 'output window, operand 0, single buffered']
    %11 = vsyncpa [#allocation5], 0
    %12 = vsyncpa [#allocation8], 0
    %13 = vsyncpa [#allocation6], 0
    // Predicated region
    $region2: #{tpu_custom_call.1} parent=1 // pred_check
      _
    $region3: #{tpu_custom_call.1} parent=1 // pred_check_branch
      %15 = sbr.rel (0) target = $region5
    $region4: #{tpu_custom_call.1} parent=1 // pred_region
      _
    $region5: #{tpu_custom_call.1} parent=1 // pred_fallthru
      _
    // Predicated region
    $region6: #{tpu_custom_call.1} parent=1 // pred_check
      _
    $region7: #{tpu_custom_call.1} parent=1 // pred_check_branch
      %17 = sbr.rel (0) target = $region9
    $region8: #{tpu_custom_call.1} parent=1 // pred_region
      %19 = vsyncadd [#allocation5], 0
      %s20 = sshll.u32 %s1, 4
      %s21 = int_to_ptr.hbm [resolvable:$true] %s20
      %s22 = sshll.u32 [#allocation4], 4
      %s23 = int_to_ptr.vmem [resolvable:$true] %s22
      %28 = dma.hbm_to_vmem [thread:$0]  %s21, 8192, %s23, [#allocation5], 512, 512, 32
    $region9: #{tpu_custom_call.1} parent=1 // pred_fallthru
      _
    // Predicated region
    $region10: #{tpu_custom_call.1} parent=1 // pred_check
      _
    $region11: #{tpu_custom_call.1} parent=1 // pred_check_branch
      %30 = sbr.rel (0) target = $region13
    $region12: #{tpu_custom_call.1} parent=1 // pred_region
      %32 = vsyncadd [#allocation8], 0
      %s33 = sshll.u32 %s2, 4
      %s34 = int_to_ptr.hbm [resolvable:$true] %s33
      %s35 = sshll.u32 [#allocation7], 4
      %s36 = int_to_ptr.vmem [resolvable:$true] %s35
      %41 = dma.hbm_to_vmem [thread:$0]  %s34, 4096, %s36, [#allocation8], 256, 256, 16
    $region13: #{tpu_custom_call.1} parent=1 // pred_fallthru
      _
    // Predicated region
    $region14: #{tpu_custom_call.1} parent=1 // pred_check
      _
    $region15: #{tpu_custom_call.1} parent=1 // pred_check_branch
      %43 = sbr.rel (0) target = $region17
    $region16: #{tpu_custom_call.1} parent=1 // pred_region
      _
    $region17: #{tpu_custom_call.1} parent=1 // pred_fallthru
      _
    // Predicated region
    $region18: #{tpu_custom_call.1} parent=1 // pred_check
      _
    $region19: #{tpu_custom_call.1} parent=1 // pred_check_branch
      %45 = sbr.rel (0) target = $region21
    $region20: #{tpu_custom_call.1} parent=1 // pred_region
      _
    $region21: #{tpu_custom_call.1} parent=1 // pred_fallthru
      _
    // Predicated region
    $region22: #{tpu_custom_call.1} parent=1 // pred_check
      _
    $region23: #{tpu_custom_call.1} parent=1 // pred_check_branch
      %47 = sbr.rel (0) target = $region25
    $region24: #{tpu_custom_call.1} parent=1 // pred_region
      %49 = dma.done [#allocation5], 8192
    $region25: #{tpu_custom_call.1} parent=1 // pred_fallthru
      _
    // Predicated region
    $region26: #{tpu_custom_call.1} parent=1 // pred_check
      _
    $region27: #{tpu_custom_call.1} parent=1 // pred_check_branch
      %51 = sbr.rel (0) target = $region29
    $region28: #{tpu_custom_call.1} parent=1 // pred_region
      %53 = dma.done [#allocation8], 4096
    $region29: #{tpu_custom_call.1} parent=1 // pred_fallthru
      _
    %v55 = vld [vmem:[%s0] sm:$0xff]
    %v56 = vld [vmem:[%s0 + $0x8] sm:$0xff]
    %v57 = vld [vmem:[%s0 + $0x10] sm:$0xff]
    %v58 = vld [vmem:[%s0 + $0x18] sm:$0xff]
    %v59 = vld [vmem:[%s0 + $0x20] sm:$0xff]
    %v60 = vld [vmem:[%s0 + $0x28] sm:$0xff]
    %v61 = vld [vmem:[%s0 + $0x30] sm:$0xff]
    %v62 = vld [vmem:[%s0 + $0x38] sm:$0xff]
    %v63 = vld [vmem:[%s0 + $0x40] sm:$0xff]
    %v64 = vld [vmem:[%s0 + $0x48] sm:$0xff]
    %v65 = vld [vmem:[%s0 + $0x50] sm:$0xff]
    %v66 = vld [vmem:[%s0 + $0x58] sm:$0xff]
    %v67 = vld [vmem:[%s0 + $0x60] sm:$0xff]
    %v68 = vld [vmem:[%s0 + $0x68] sm:$0xff]
    %v69 = vld [vmem:[%s0 + $0x70] sm:$0xff]
    %v70 = vld [vmem:[%s0 + $0x78] sm:$0xff]
    %v71 = vlaneseq
    %v72 = vand.u32 %v71, 127
    %73 = vset.pattern.permute.xlu0 0
    %74 = vperm.xlu0 %73, %v55
    %v75 = vpop.permute.xlu0 %74
    %76 = vset.pattern.permute.xlu0 0
    %77 = vperm.xlu0 %76, %v56
    %v78 = vpop.permute.xlu0 %77
    %79 = vset.pattern.permute.xlu0 0
    %80 = vperm.xlu0 %79, %v57
    %v81 = vpop.permute.xlu0 %80
    %82 = vset.pattern.permute.xlu0 0
    %83 = vperm.xlu0 %82, %v58
    %v84 = vpop.permute.xlu0 %83
    %85 = vset.pattern.permute.xlu0 0
    %86 = vperm.xlu0 %85, %v59
    %v87 = vpop.permute.xlu0 %86
    %88 = vset.pattern.permute.xlu0 0
    %89 = vperm.xlu0 %88, %v60
    %v90 = vpop.permute.xlu0 %89
    %91 = vset.pattern.permute.xlu0 0
    %92 = vperm.xlu0 %91, %v61
    %v93 = vpop.permute.xlu0 %92
    %94 = vset.pattern.permute.xlu0 0
    %95 = vperm.xlu0 %94, %v62
    %v96 = vpop.permute.xlu0 %95
    %97 = vset.pattern.permute.xlu0 0
    %98 = vperm.xlu0 %97, %v63
    %v99 = vpop.permute.xlu0 %98
    %100 = vset.pattern.permute.xlu0 0
    %101 = vperm.xlu0 %100, %v64
    %v102 = vpop.permute.xlu0 %101
    %103 = vset.pattern.permute.xlu0 0
    %104 = vperm.xlu0 %103, %v65
    %v105 = vpop.permute.xlu0 %104
    %106 = vset.pattern.permute.xlu0 0
    %107 = vperm.xlu0 %106, %v66
    %v108 = vpop.permute.xlu0 %107
    %109 = vset.pattern.permute.xlu0 0
    %110 = vperm.xlu0 %109, %v67
    %v111 = vpop.permute.xlu0 %110
    %112 = vset.pattern.permute.xlu0 0
    %113 = vperm.xlu0 %112, %v68
    %v114 = vpop.permute.xlu0 %113
    %115 = vset.pattern.permute.xlu0 0
    %116 = vperm.xlu0 %115, %v69
    %v117 = vpop.permute.xlu0 %116
    %118 = vset.pattern.permute.xlu0 0
    %119 = vperm.xlu0 %118, %v70
    %v120 = vpop.permute.xlu0 %119
    %vm121 = vcmp.eq.s32.totalorder %v72, %v75
    %vm122 = vcmp.eq.s32.totalorder %v72, %v78
    %vm123 = vcmp.eq.s32.totalorder %v72, %v81
    %vm124 = vcmp.eq.s32.totalorder %v72, %v84
    %vm125 = vcmp.eq.s32.totalorder %v72, %v87
    %vm126 = vcmp.eq.s32.totalorder %v72, %v90
    %vm127 = vcmp.eq.s32.totalorder %v72, %v93
    %vm128 = vcmp.eq.s32.totalorder %v72, %v96
    %vm129 = vcmp.eq.s32.totalorder %v72, %v99
    %vm130 = vcmp.eq.s32.totalorder %v72, %v102
    %vm131 = vcmp.eq.s32.totalorder %v72, %v105
    %vm132 = vcmp.eq.s32.totalorder %v72, %v108
    %vm133 = vcmp.eq.s32.totalorder %v72, %v111
    %vm134 = vcmp.eq.s32.totalorder %v72, %v114
    %vm135 = vcmp.eq.s32.totalorder %v72, %v117
    %vm136 = vcmp.eq.s32.totalorder %v72, %v120
    %v137 = vsel %vm121, 1, 0
    %v138 = vsel %vm122, 1, 0
    %v139 = vsel %vm123, 1, 0
    %v140 = vsel %vm124, 1, 0
    %v141 = vsel %vm125, 1, 0
    %v142 = vsel %vm126, 1, 0
    %v143 = vsel %vm127, 1, 0
    %v144 = vsel %vm128, 1, 0
    %v145 = vsel %vm129, 1, 0
    %v146 = vsel %vm130, 1, 0
    %v147 = vsel %vm131, 1, 0
    %v148 = vsel %vm132, 1, 0
    %v149 = vsel %vm133, 1, 0
    %v150 = vsel %vm134, 1, 0
    %v151 = vsel %vm135, 1, 0
    %v152 = vsel %vm136, 1, 0
    %v153 = vcvt.s32.f32 %v137
    %v154 = vcvt.s32.f32 %v138
    %v155 = vcvt.s32.f32 %v139
    %v156 = vcvt.s32.f32 %v140
    %v157 = vcvt.s32.f32 %v141
    %v158 = vcvt.s32.f32 %v142
    %v159 = vcvt.s32.f32 %v143
    %v160 = vcvt.s32.f32 %v144
    %v161 = vcvt.s32.f32 %v145
    %v162 = vcvt.s32.f32 %v146
    %v163 = vcvt.s32.f32 %v147
    %v164 = vcvt.s32.f32 %v148
    %v165 = vcvt.s32.f32 %v149
    %v166 = vcvt.s32.f32 %v150
    %v167 = vcvt.s32.f32 %v151
    %v168 = vcvt.s32.f32 %v152
    %v169 = vld [vmem:[#allocation4] sm:$0xff]
    %v170 = vld [vmem:[#allocation4 + $0x8] sm:$0xff]
    %v171 = vld [vmem:[#allocation4 + $0x10] sm:$0xff]
    %v172 = vld [vmem:[#allocation4 + $0x18] sm:$0xff]
    %v173 = vld [vmem:[#allocation4 + $0x20] sm:$0xff]
    %v174 = vld [vmem:[#allocation4 + $0x28] sm:$0xff]
    %v175 = vld [vmem:[#allocation4 + $0x30] sm:$0xff]
    %v176 = vld [vmem:[#allocation4 + $0x38] sm:$0xff]
    %v177 = vld [vmem:[#allocation4 + $0x40] sm:$0xff]
    %v178 = vld [vmem:[#allocation4 + $0x48] sm:$0xff]
    %v179 = vld [vmem:[#allocation4 + $0x50] sm:$0xff]
    %v180 = vld [vmem:[#allocation4 + $0x58] sm:$0xff]
    %v181 = vld [vmem:[#allocation4 + $0x60] sm:$0xff]
    %v182 = vld [vmem:[#allocation4 + $0x68] sm:$0xff]
    %v183 = vld [vmem:[#allocation4 + $0x70] sm:$0xff]
    %v184 = vld [vmem:[#allocation4 + $0x78] sm:$0xff]
    %v185 = vld [vmem:[#allocation4 + $0x80] sm:$0xff]
    %v186 = vld [vmem:[#allocation4 + $0x88] sm:$0xff]
    %v187 = vld [vmem:[#allocation4 + $0x90] sm:$0xff]
    %v188 = vld [vmem:[#allocation4 + $0x98] sm:$0xff]
    %v189 = vld [vmem:[#allocation4 + $0xa0] sm:$0xff]
    %v190 = vld [vmem:[#allocation4 + $0xa8] sm:$0xff]
    %v191 = vld [vmem:[#allocation4 + $0xb0] sm:$0xff]
    %v192 = vld [vmem:[#allocation4 + $0xb8] sm:$0xff]
    %v193 = vld [vmem:[#allocation4 + $0xc0] sm:$0xff]
    %v194 = vld [vmem:[#allocation4 + $0xc8] sm:$0xff]
    %v195 = vld [vmem:[#allocation4 + $0xd0] sm:$0xff]
    %v196 = vld [vmem:[#allocation4 + $0xd8] sm:$0xff]
    %v197 = vld [vmem:[#allocation4 + $0xe0] sm:$0xff]
    %v198 = vld [vmem:[#allocation4 + $0xe8] sm:$0xff]
    %v199 = vld [vmem:[#allocation4 + $0xf0] sm:$0xff]
    %v200 = vld [vmem:[#allocation4 + $0xf8] sm:$0xff]
    %v201 = vld [vmem:[#allocation4 + $0x100] sm:$0xff]
    %v202 = vld [vmem:[#allocation4 + $0x108] sm:$0xff]
    %v203 = vld [vmem:[#allocation4 + $0x110] sm:$0xff]
    %v204 = vld [vmem:[#allocation4 + $0x118] sm:$0xff]
    %v205 = vld [vmem:[#allocation4 + $0x120] sm:$0xff]
    %v206 = vld [vmem:[#allocation4 + $0x128] sm:$0xff]
    %v207 = vld [vmem:[#allocation4 + $0x130] sm:$0xff]
    %v208 = vld [vmem:[#allocation4 + $0x138] sm:$0xff]
    %v209 = vld [vmem:[#allocation4 + $0x140] sm:$0xff]
    %v210 = vld [vmem:[#allocation4 + $0x148] sm:$0xff]
    %v211 = vld [vmem:[#allocation4 + $0x150] sm:$0xff]
    %v212 = vld [vmem:[#allocation4 + $0x158] sm:$0xff]
    %v213 = vld [vmem:[#allocation4 + $0x160] sm:$0xff]
    %v214 = vld [vmem:[#allocation4 + $0x168] sm:$0xff]
    %v215 = vld [vmem:[#allocation4 + $0x170] sm:$0xff]
    %v216 = vld [vmem:[#allocation4 + $0x178] sm:$0xff]
    %v217 = vld [vmem:[#allocation4 + $0x180] sm:$0xff]
    %v218 = vld [vmem:[#allocation4 + $0x188] sm:$0xff]
    %v219 = vld [vmem:[#allocation4 + $0x190] sm:$0xff]
    %v220 = vld [vmem:[#allocation4 + $0x198] sm:$0xff]
    %v221 = vld [vmem:[#allocation4 + $0x1a0] sm:$0xff]
    %v222 = vld [vmem:[#allocation4 + $0x1a8] sm:$0xff]
    %v223 = vld [vmem:[#allocation4 + $0x1b0] sm:$0xff]
    %v224 = vld [vmem:[#allocation4 + $0x1b8] sm:$0xff]
    %v225 = vld [vmem:[#allocation4 + $0x1c0] sm:$0xff]
    %v226 = vld [vmem:[#allocation4 + $0x1c8] sm:$0xff]
    %v227 = vld [vmem:[#allocation4 + $0x1d0] sm:$0xff]
    %v228 = vld [vmem:[#allocation4 + $0x1d8] sm:$0xff]
    %v229 = vld [vmem:[#allocation4 + $0x1e0] sm:$0xff]
    %v230 = vld [vmem:[#allocation4 + $0x1e8] sm:$0xff]
    %v231 = vld [vmem:[#allocation4 + $0x1f0] sm:$0xff]
    %v232 = vld [vmem:[#allocation4 + $0x1f8] sm:$0xff]
    %233 = vmatpush.msra.mxu0 %v229
    %234 = vmatpush.msra.mxu0 %v225
    %235 = vmatpush.msra.mxu0 %v221
    %236 = vmatpush.msra.mxu0 %v217
    %237 = vmatpush.msra.mxu0 %v213
    %238 = vmatpush.msra.mxu0 %v209
    %239 = vmatpush.msra.mxu0 %v205
    %240 = vmatpush.msra.mxu0 %v201
    %241 = vmatpush.msra.mxu0 %v197
    %242 = vmatpush.msra.mxu0 %v193
    %243 = vmatpush.msra.mxu0 %v189
    %244 = vmatpush.msra.mxu0 %v185
    %245 = vmatpush.msra.mxu0 %v181
    %246 = vmatpush.msra.mxu0 %v177
    %247 = vmatpush.msra.mxu0 %v173
    %248 = vmatpush.msra.mxu0 %v169
    %249 = vmatmul.f32.gmra.mxu0 %v153
    %v250 = vpop.f32.mrf.mxu0
    %v251 = vadd.f32 0.0, %v250
    %252 = vmatmul.f32.gmra.mxu0 %v154
    %v253 = vpop.f32.mrf.mxu0
    %v254 = vadd.f32 0.0, %v253
    %255 = vmatmul.f32.gmra.mxu0 %v155
    %v256 = vpop.f32.mrf.mxu0
    %v257 = vadd.f32 0.0, %v256
    %258 = vmatmul.f32.gmra.mxu0 %v156
    %v259 = vpop.f32.mrf.mxu0
    %v260 = vadd.f32 0.0, %v259
    %261 = vmatmul.f32.gmra.mxu0 %v157
    %v262 = vpop.f32.mrf.mxu0
    %v263 = vadd.f32 0.0, %v262
    %264 = vmatmul.f32.gmra.mxu0 %v158
    %v265 = vpop.f32.mrf.mxu0
    %v266 = vadd.f32 0.0, %v265
    %267 = vmatmul.f32.gmra.mxu0 %v159
    %v268 = vpop.f32.mrf.mxu0
    %v269 = vadd.f32 0.0, %v268
    %270 = vmatmul.f32.gmra.mxu0 %v160
    %v271 = vpop.f32.mrf.mxu0
    %v272 = vadd.f32 0.0, %v271
    %273 = vmatmul.f32.gmra.mxu0 %v161
    %v274 = vpop.f32.mrf.mxu0
    %v275 = vadd.f32 0.0, %v274
    %276 = vmatmul.f32.gmra.mxu0 %v162
    %v277 = vpop.f32.mrf.mxu0
    %v278 = vadd.f32 0.0, %v277
    %279 = vmatmul.f32.gmra.mxu0 %v163
    %v280 = vpop.f32.mrf.mxu0
    %v281 = vadd.f32 0.0, %v280
    %282 = vmatmul.f32.gmra.mxu0 %v164
    %v283 = vpop.f32.mrf.mxu0
    %v284 = vadd.f32 0.0, %v283
    %285 = vmatmul.f32.gmra.mxu0 %v165
    %v286 = vpop.f32.mrf.mxu0
    %v287 = vadd.f32 0.0, %v286
    %288 = vmatmul.f32.gmra.mxu0 %v166
    %v289 = vpop.f32.mrf.mxu0
    %v290 = vadd.f32 0.0, %v289
    %291 = vmatmul.f32.gmra.mxu0 %v167
    %v292 = vpop.f32.mrf.mxu0
    %v293 = vadd.f32 0.0, %v292
    %294 = vmatmul.f32.gmra.mxu0 %v168
    %v295 = vpop.f32.mrf.mxu0
    %v296 = vadd.f32 0.0, %v295
    %297 = vdwg.mxu0
    %298 = vmatpush.msra.mxu0 %v230
    %299 = vmatpush.msra.mxu0 %v226
    %300 = vmatpush.msra.mxu0 %v222
    %301 = vmatpush.msra.mxu0 %v218
    %302 = vmatpush.msra.mxu0 %v214
    %303 = vmatpush.msra.mxu0 %v210
    %304 = vmatpush.msra.mxu0 %v206
    %305 = vmatpush.msra.mxu0 %v202
    %306 = vmatpush.msra.mxu0 %v198
    %307 = vmatpush.msra.mxu0 %v194
    %308 = vmatpush.msra.mxu0 %v190
    %309 = vmatpush.msra.mxu0 %v186
    %310 = vmatpush.msra.mxu0 %v182
    %311 = vmatpush.msra.mxu0 %v178
    %312 = vmatpush.msra.mxu0 %v174
    %313 = vmatpush.msra.mxu0 %v170
    %314 = vmatmul.f32.gmra.mxu0 %v153
    %v315 = vpop.f32.mrf.mxu0
    %v316 = vadd.f32 0.0, %v315
    %317 = vmatmul.f32.gmra.mxu0 %v154
    %v318 = vpop.f32.mrf.mxu0
    %v319 = vadd.f32 0.0, %v318
    %320 = vmatmul.f32.gmra.mxu0 %v155
    %v321 = vpop.f32.mrf.mxu0
    %v322 = vadd.f32 0.0, %v321
    %323 = vmatmul.f32.gmra.mxu0 %v156
    %v324 = vpop.f32.mrf.mxu0
    %v325 = vadd.f32 0.0, %v324
    %326 = vmatmul.f32.gmra.mxu0 %v157
    %v327 = vpop.f32.mrf.mxu0
    %v328 = vadd.f32 0.0, %v327
    %329 = vmatmul.f32.gmra.mxu0 %v158
    %v330 = vpop.f32.mrf.mxu0
    %v331 = vadd.f32 0.0, %v330
    %332 = vmatmul.f32.gmra.mxu0 %v159
    %v333 = vpop.f32.mrf.mxu0
    %v334 = vadd.f32 0.0, %v333
    %335 = vmatmul.f32.gmra.mxu0 %v160
    %v336 = vpop.f32.mrf.mxu0
    %v337 = vadd.f32 0.0, %v336
    %338 = vmatmul.f32.gmra.mxu0 %v161
    %v339 = vpop.f32.mrf.mxu0
    %v340 = vadd.f32 0.0, %v339
    %341 = vmatmul.f32.gmra.mxu0 %v162
    %v342 = vpop.f32.mrf.mxu0
    %v343 = vadd.f32 0.0, %v342
    %344 = vmatmul.f32.gmra.mxu0 %v163
    %v345 = vpop.f32.mrf.mxu0
    %v346 = vadd.f32 0.0, %v345
    %347 = vmatmul.f32.gmra.mxu0 %v164
    %v348 = vpop.f32.mrf.mxu0
    %v349 = vadd.f32 0.0, %v348
    %350 = vmatmul.f32.gmra.mxu0 %v165
    %v351 = vpop.f32.mrf.mxu0
    %v352 = vadd.f32 0.0, %v351
    %353 = vmatmul.f32.gmra.mxu0 %v166
    %v354 = vpop.f32.mrf.mxu0
    %v355 = vadd.f32 0.0, %v354
    %356 = vmatmul.f32.gmra.mxu0 %v167
    %v357 = vpop.f32.mrf.mxu0
    %v358 = vadd.f32 0.0, %v357
    %359 = vmatmul.f32.gmra.mxu0 %v168
    %v360 = vpop.f32.mrf.mxu0
    %v361 = vadd.f32 0.0, %v360
    %362 = vdwg.mxu0
    %363 = vmatpush.msra.mxu0 %v231
    %364 = vmatpush.msra.mxu0 %v227
    %365 = vmatpush.msra.mxu0 %v223
    %366 = vmatpush.msra.mxu0 %v219
    %367 = vmatpush.msra.mxu0 %v215
    %368 = vmatpush.msra.mxu0 %v211
    %369 = vmatpush.msra.mxu0 %v207
    %370 = vmatpush.msra.mxu0 %v203
    %371 = vmatpush.msra.mxu0 %v199
    %372 = vmatpush.msra.mxu0 %v195
    %373 = vmatpush.msra.mxu0 %v191
    %374 = vmatpush.msra.mxu0 %v187
    %375 = vmatpush.msra.mxu0 %v183
    %376 = vmatpush.msra.mxu0 %v179
    %377 = vmatpush.msra.mxu0 %v175
    %378 = vmatpush.msra.mxu0 %v171
    %379 = vmatmul.f32.gmra.mxu0 %v153
    %v380 = vpop.f32.mrf.mxu0
    %v381 = vadd.f32 0.0, %v380
    %382 = vmatmul.f32.gmra.mxu0 %v154
    %v383 = vpop.f32.mrf.mxu0
    %v384 = vadd.f32 0.0, %v383
    %385 = vmatmul.f32.gmra.mxu0 %v155
    %v386 = vpop.f32.mrf.mxu0
    %v387 = vadd.f32 0.0, %v386
    %388 = vmatmul.f32.gmra.mxu0 %v156
    %v389 = vpop.f32.mrf.mxu0
    %v390 = vadd.f32 0.0, %v389
    %391 = vmatmul.f32.gmra.mxu0 %v157
    %v392 = vpop.f32.mrf.mxu0
    %v393 = vadd.f32 0.0, %v392
    %394 = vmatmul.f32.gmra.mxu0 %v158
    %v395 = vpop.f32.mrf.mxu0
    %v396 = vadd.f32 0.0, %v395
    %397 = vmatmul.f32.gmra.mxu0 %v159
    %v398 = vpop.f32.mrf.mxu0
    %v399 = vadd.f32 0.0, %v398
    %400 = vmatmul.f32.gmra.mxu0 %v160
    %v401 = vpop.f32.mrf.mxu0
    %v402 = vadd.f32 0.0, %v401
    %403 = vmatmul.f32.gmra.mxu0 %v161
    %v404 = vpop.f32.mrf.mxu0
    %v405 = vadd.f32 0.0, %v404
    %406 = vmatmul.f32.gmra.mxu0 %v162
    %v407 = vpop.f32.mrf.mxu0
    %v408 = vadd.f32 0.0, %v407
    %409 = vmatmul.f32.gmra.mxu0 %v163
    %v410 = vpop.f32.mrf.mxu0
    %v411 = vadd.f32 0.0, %v410
    %412 = vmatmul.f32.gmra.mxu0 %v164
    %v413 = vpop.f32.mrf.mxu0
    %v414 = vadd.f32 0.0, %v413
    %415 = vmatmul.f32.gmra.mxu0 %v165
    %v416 = vpop.f32.mrf.mxu0
    %v417 = vadd.f32 0.0, %v416
    %418 = vmatmul.f32.gmra.mxu0 %v166
    %v419 = vpop.f32.mrf.mxu0
    %v420 = vadd.f32 0.0, %v419
    %421 = vmatmul.f32.gmra.mxu0 %v167
    %v422 = vpop.f32.mrf.mxu0
    %v423 = vadd.f32 0.0, %v422
    %424 = vmatmul.f32.gmra.mxu0 %v168
    %v425 = vpop.f32.mrf.mxu0
    %v426 = vadd.f32 0.0, %v425
    %427 = vdwg.mxu0
    %428 = vmatpush.msra.mxu0 %v232
    %429 = vmatpush.msra.mxu0 %v228
    %430 = vmatpush.msra.mxu0 %v224
    %431 = vmatpush.msra.mxu0 %v220
    %432 = vmatpush.msra.mxu0 %v216
    %433 = vmatpush.msra.mxu0 %v212
    %434 = vmatpush.msra.mxu0 %v208
    %435 = vmatpush.msra.mxu0 %v204
    %436 = vmatpush.msra.mxu0 %v200
    %437 = vmatpush.msra.mxu0 %v196
    %438 = vmatpush.msra.mxu0 %v192
    %439 = vmatpush.msra.mxu0 %v188
    %440 = vmatpush.msra.mxu0 %v184
    %441 = vmatpush.msra.mxu0 %v180
    %442 = vmatpush.msra.mxu0 %v176
    %443 = vmatpush.msra.mxu0 %v172
    %444 = vmatmul.f32.gmra.mxu0 %v153
    %v445 = vpop.f32.mrf.mxu0
    %v446 = vadd.f32 0.0, %v445
    %447 = vmatmul.f32.gmra.mxu0 %v154
    %v448 = vpop.f32.mrf.mxu0
    %v449 = vadd.f32 0.0, %v448
    %450 = vmatmul.f32.gmra.mxu0 %v155
    %v451 = vpop.f32.mrf.mxu0
    %v452 = vadd.f32 0.0, %v451
    %453 = vmatmul.f32.gmra.mxu0 %v156
    %v454 = vpop.f32.mrf.mxu0
    %v455 = vadd.f32 0.0, %v454
    %456 = vmatmul.f32.gmra.mxu0 %v157
    %v457 = vpop.f32.mrf.mxu0
    %v458 = vadd.f32 0.0, %v457
    %459 = vmatmul.f32.gmra.mxu0 %v158
    %v460 = vpop.f32.mrf.mxu0
    %v461 = vadd.f32 0.0, %v460
    %462 = vmatmul.f32.gmra.mxu0 %v159
    %v463 = vpop.f32.mrf.mxu0
    %v464 = vadd.f32 0.0, %v463
    %465 = vmatmul.f32.gmra.mxu0 %v160
    %v466 = vpop.f32.mrf.mxu0
    %v467 = vadd.f32 0.0, %v466
    %468 = vmatmul.f32.gmra.mxu0 %v161
    %v469 = vpop.f32.mrf.mxu0
    %v470 = vadd.f32 0.0, %v469
    %471 = vmatmul.f32.gmra.mxu0 %v162
    %v472 = vpop.f32.mrf.mxu0
    %v473 = vadd.f32 0.0, %v472
    %474 = vmatmul.f32.gmra.mxu0 %v163
    %v475 = vpop.f32.mrf.mxu0
    %v476 = vadd.f32 0.0, %v475
    %477 = vmatmul.f32.gmra.mxu0 %v164
    %v478 = vpop.f32.mrf.mxu0
    %v479 = vadd.f32 0.0, %v478
    %480 = vmatmul.f32.gmra.mxu0 %v165
    %v481 = vpop.f32.mrf.mxu0
    %v482 = vadd.f32 0.0, %v481
    %483 = vmatmul.f32.gmra.mxu0 %v166
    %v484 = vpop.f32.mrf.mxu0
    %v485 = vadd.f32 0.0, %v484
    %486 = vmatmul.f32.gmra.mxu0 %v167
    %v487 = vpop.f32.mrf.mxu0
    %v488 = vadd.f32 0.0, %v487
    %489 = vmatmul.f32.gmra.mxu0 %v168
    %v490 = vpop.f32.mrf.mxu0
    %v491 = vadd.f32 0.0, %v490
    %492 = vdwg.mxu0
    %493 = vst [vmem:[#allocation2] sm:$0xff] %v251
    %494 = vst [vmem:[#allocation2 + $0x8] sm:$0xff] %v316
    %495 = vst [vmem:[#allocation2 + $0x10] sm:$0xff] %v381
    %496 = vst [vmem:[#allocation2 + $0x18] sm:$0xff] %v446
    %497 = vst [vmem:[#allocation2 + $0x20] sm:$0xff] %v254
    %498 = vst [vmem:[#allocation2 + $0x28] sm:$0xff] %v319
    %499 = vst [vmem:[#allocation2 + $0x30] sm:$0xff] %v384
    %500 = vst [vmem:[#allocation2 + $0x38] sm:$0xff] %v449
    %501 = vst [vmem:[#allocation2 + $0x40] sm:$0xff] %v257
    %502 = vst [vmem:[#allocation2 + $0x48] sm:$0xff] %v322
    %503 = vst [vmem:[#allocation2 + $0x50] sm:$0xff] %v387
    %504 = vst [vmem:[#allocation2 + $0x58] sm:$0xff] %v452
    %505 = vst [vmem:[#allocation2 + $0x60] sm:$0xff] %v260
    %506 = vst [vmem:[#allocation2 + $0x68] sm:$0xff] %v325
    %507 = vst [vmem:[#allocation2 + $0x70] sm:$0xff] %v390
    %508 = vst [vmem:[#allocation2 + $0x78] sm:$0xff] %v455
    %509 = vst [vmem:[#allocation2 + $0x80] sm:$0xff] %v263
    %510 = vst [vmem:[#allocation2 + $0x88] sm:$0xff] %v328
    %511 = vst [vmem:[#allocation2 + $0x90] sm:$0xff] %v393
    %512 = vst [vmem:[#allocation2 + $0x98] sm:$0xff] %v458
    %513 = vst [vmem:[#allocation2 + $0xa0] sm:$0xff] %v266
    %514 = vst [vmem:[#allocation2 + $0xa8] sm:$0xff] %v331
    %515 = vst [vmem:[#allocation2 + $0xb0] sm:$0xff] %v396
    %516 = vst [vmem:[#allocation2 + $0xb8] sm:$0xff] %v461
    %517 = vst [vmem:[#allocation2 + $0xc0] sm:$0xff] %v269
    %518 = vst [vmem:[#allocation2 + $0xc8] sm:$0xff] %v334
    %519 = vst [vmem:[#allocation2 + $0xd0] sm:$0xff] %v399
    %520 = vst [vmem:[#allocation2 + $0xd8] sm:$0xff] %v464
    %521 = vst [vmem:[#allocation2 + $0xe0] sm:$0xff] %v272
    %522 = vst [vmem:[#allocation2 + $0xe8] sm:$0xff] %v337
    %523 = vst [vmem:[#allocation2 + $0xf0] sm:$0xff] %v402
    %524 = vst [vmem:[#allocation2 + $0xf8] sm:$0xff] %v467
    %525 = vst [vmem:[#allocation2 + $0x100] sm:$0xff] %v275
    %526 = vst [vmem:[#allocation2 + $0x108] sm:$0xff] %v340
    %527 = vst [vmem:[#allocation2 + $0x110] sm:$0xff] %v405
    %528 = vst [vmem:[#allocation2 + $0x118] sm:$0xff] %v470
    %529 = vst [vmem:[#allocation2 + $0x120] sm:$0xff] %v278
    %530 = vst [vmem:[#allocation2 + $0x128] sm:$0xff] %v343
    %531 = vst [vmem:[#allocation2 + $0x130] sm:$0xff] %v408
    %532 = vst [vmem:[#allocation2 + $0x138] sm:$0xff] %v473
    %533 = vst [vmem:[#allocation2 + $0x140] sm:$0xff] %v281
    %534 = vst [vmem:[#allocation2 + $0x148] sm:$0xff] %v346
    %535 = vst [vmem:[#allocation2 + $0x150] sm:$0xff] %v411
    %536 = vst [vmem:[#allocation2 + $0x158] sm:$0xff] %v476
    %537 = vst [vmem:[#allocation2 + $0x160] sm:$0xff] %v284
    %538 = vst [vmem:[#allocation2 + $0x168] sm:$0xff] %v349
    %539 = vst [vmem:[#allocation2 + $0x170] sm:$0xff] %v414
    %540 = vst [vmem:[#allocation2 + $0x178] sm:$0xff] %v479
    %541 = vst [vmem:[#allocation2 + $0x180] sm:$0xff] %v287
    %542 = vst [vmem:[#allocation2 + $0x188] sm:$0xff] %v352
    %543 = vst [vmem:[#allocation2 + $0x190] sm:$0xff] %v417
    %544 = vst [vmem:[#allocation2 + $0x198] sm:$0xff] %v482
    %545 = vst [vmem:[#allocation2 + $0x1a0] sm:$0xff] %v290
    %546 = vst [vmem:[#allocation2 + $0x1a8] sm:$0xff] %v355
    %547 = vst [vmem:[#allocation2 + $0x1b0] sm:$0xff] %v420
    %548 = vst [vmem:[#allocation2 + $0x1b8] sm:$0xff] %v485
    %549 = vst [vmem:[#allocation2 + $0x1c0] sm:$0xff] %v293
    %550 = vst [vmem:[#allocation2 + $0x1c8] sm:$0xff] %v358
    %551 = vst [vmem:[#allocation2 + $0x1d0] sm:$0xff] %v423
    %552 = vst [vmem:[#allocation2 + $0x1d8] sm:$0xff] %v488
    %553 = vst [vmem:[#allocation2 + $0x1e0] sm:$0xff] %v296
    %554 = vst [vmem:[#allocation2 + $0x1e8] sm:$0xff] %v361
    %555 = vst [vmem:[#allocation2 + $0x1f0] sm:$0xff] %v426
    %556 = vst [vmem:[#allocation2 + $0x1f8] sm:$0xff] %v491
    %v557 = vld [vmem:[#allocation7] sm:$0xff]
    %v558 = vld [vmem:[#allocation7 + $0x8] sm:$0xff]
    %v559 = vld [vmem:[#allocation7 + $0x10] sm:$0xff]
    %v560 = vld [vmem:[#allocation7 + $0x18] sm:$0xff]
    %v561 = vld [vmem:[#allocation7 + $0x20] sm:$0xff]
    %v562 = vld [vmem:[#allocation7 + $0x28] sm:$0xff]
    %v563 = vld [vmem:[#allocation7 + $0x30] sm:$0xff]
    %v564 = vld [vmem:[#allocation7 + $0x38] sm:$0xff]
    %v565 = vld [vmem:[#allocation7 + $0x40] sm:$0xff]
    %v566 = vld [vmem:[#allocation7 + $0x48] sm:$0xff]
    %v567 = vld [vmem:[#allocation7 + $0x50] sm:$0xff]
    %v568 = vld [vmem:[#allocation7 + $0x58] sm:$0xff]
    %v569 = vld [vmem:[#allocation7 + $0x60] sm:$0xff]
    %v570 = vld [vmem:[#allocation7 + $0x68] sm:$0xff]
    %v571 = vld [vmem:[#allocation7 + $0x70] sm:$0xff]
    %v572 = vld [vmem:[#allocation7 + $0x78] sm:$0xff]
    %v573 = vld [vmem:[#allocation7 + $0x80] sm:$0xff]
    %v574 = vld [vmem:[#allocation7 + $0x88] sm:$0xff]
    %v575 = vld [vmem:[#allocation7 + $0x90] sm:$0xff]
    %v576 = vld [vmem:[#allocation7 + $0x98] sm:$0xff]
    %v577 = vld [vmem:[#allocation7 + $0xa0] sm:$0xff]
    %v578 = vld [vmem:[#allocation7 + $0xa8] sm:$0xff]
    %v579 = vld [vmem:[#allocation7 + $0xb0] sm:$0xff]
    %v580 = vld [vmem:[#allocation7 + $0xb8] sm:$0xff]
    %v581 = vld [vmem:[#allocation7 + $0xc0] sm:$0xff]
    %v582 = vld [vmem:[#allocation7 + $0xc8] sm:$0xff]
    %v583 = vld [vmem:[#allocation7 + $0xd0] sm:$0xff]
    %v584 = vld [vmem:[#allocation7 + $0xd8] sm:$0xff]
    %v585 = vld [vmem:[#allocation7 + $0xe0] sm:$0xff]
    %v586 = vld [vmem:[#allocation7 + $0xe8] sm:$0xff]
    %v587 = vld [vmem:[#allocation7 + $0xf0] sm:$0xff]
    %v588 = vld [vmem:[#allocation7 + $0xf8] sm:$0xff]
    %v589 = vld [vmem:[#allocation2] sm:$0xff]
    %v590 = vld [vmem:[#allocation2 + $0x8] sm:$0xff]
    %v591 = vld [vmem:[#allocation2 + $0x10] sm:$0xff]
    %v592 = vld [vmem:[#allocation2 + $0x18] sm:$0xff]
    %v593 = vld [vmem:[#allocation2 + $0x20] sm:$0xff]
    %v594 = vld [vmem:[#allocation2 + $0x28] sm:$0xff]
    %v595 = vld [vmem:[#allocation2 + $0x30] sm:$0xff]
    %v596 = vld [vmem:[#allocation2 + $0x38] sm:$0xff]
    %v629 = vunpack.c.l.b16 %v557
    %v630 = vunpack.c.h.b16 %v557
    %v631 = vunpack.c.l.b16 %v558
    %v632 = vunpack.c.h.b16 %v558
    %v633 = vunpack.c.l.b16 %v559
    %v634 = vunpack.c.h.b16 %v559
    %v635 = vunpack.c.l.b16 %v560
    %v636 = vunpack.c.h.b16 %v560
    %v637 = vunpack.c.l.b16 %v561
    %v638 = vunpack.c.h.b16 %v561
    %v639 = vunpack.c.l.b16 %v562
    %v640 = vunpack.c.h.b16 %v562
    %v641 = vunpack.c.l.b16 %v563
    %v642 = vunpack.c.h.b16 %v563
    %v643 = vunpack.c.l.b16 %v564
    %v644 = vunpack.c.h.b16 %v564
    %v645 = vunpack.c.l.b16 %v565
    %v646 = vunpack.c.h.b16 %v565
    %v647 = vunpack.c.l.b16 %v566
    %v648 = vunpack.c.h.b16 %v566
    %v649 = vunpack.c.l.b16 %v567
    %v650 = vunpack.c.h.b16 %v567
    %v651 = vunpack.c.l.b16 %v568
    %v652 = vunpack.c.h.b16 %v568
    %v653 = vunpack.c.l.b16 %v569
    %v654 = vunpack.c.h.b16 %v569
    %v655 = vunpack.c.l.b16 %v570
    %v656 = vunpack.c.h.b16 %v570
    %v657 = vunpack.c.l.b16 %v571
    %v658 = vunpack.c.h.b16 %v571
    %v659 = vunpack.c.l.b16 %v572
    %v660 = vunpack.c.h.b16 %v572
    %v661 = vunpack.c.l.b16 %v573
    %v662 = vunpack.c.h.b16 %v573
    %v663 = vunpack.c.l.b16 %v574
    %v664 = vunpack.c.h.b16 %v574
    %v665 = vunpack.c.l.b16 %v575
    %v666 = vunpack.c.h.b16 %v575
    %v667 = vunpack.c.l.b16 %v576
    %v668 = vunpack.c.h.b16 %v576
    %v669 = vunpack.c.l.b16 %v577
    %v670 = vunpack.c.h.b16 %v577
    %v671 = vunpack.c.l.b16 %v578
    %v672 = vunpack.c.h.b16 %v578
    %v673 = vunpack.c.l.b16 %v579
    %v674 = vunpack.c.h.b16 %v579
    %v675 = vunpack.c.l.b16 %v580
    %v676 = vunpack.c.h.b16 %v580
    %v677 = vunpack.c.l.b16 %v581
    %v678 = vunpack.c.h.b16 %v581
    %v679 = vunpack.c.l.b16 %v582
    %v680 = vunpack.c.h.b16 %v582
    %v681 = vunpack.c.l.b16 %v583
    %v682 = vunpack.c.h.b16 %v583
    %v683 = vunpack.c.l.b16 %v584
    %v684 = vunpack.c.h.b16 %v584
    %v685 = vunpack.c.l.b16 %v585
    %v686 = vunpack.c.h.b16 %v585
    %v687 = vunpack.c.l.b16 %v586
    %v688 = vunpack.c.h.b16 %v586
    %v689 = vunpack.c.l.b16 %v587
    %v690 = vunpack.c.h.b16 %v587
    %v691 = vunpack.c.l.b16 %v588
    %v692 = vunpack.c.h.b16 %v588
    %v693 = vpack.c.b16 %v633, %v629
    %v694 = vpack.c.b16 %v634, %v630
    %v695 = vpack.c.b16 %v635, %v631
    %v696 = vpack.c.b16 %v636, %v632
    %v697 = vpack.c.b16 %v641, %v637
    %v698 = vpack.c.b16 %v642, %v638
    %v699 = vpack.c.b16 %v643, %v639
    %v700 = vpack.c.b16 %v644, %v640
    %v701 = vpack.c.b16 %v649, %v645
    %v702 = vpack.c.b16 %v650, %v646
    %v703 = vpack.c.b16 %v651, %v647
    %v704 = vpack.c.b16 %v652, %v648
    %v705 = vpack.c.b16 %v657, %v653
    %v706 = vpack.c.b16 %v658, %v654
    %v707 = vpack.c.b16 %v659, %v655
    %v708 = vpack.c.b16 %v660, %v656
    %v709 = vpack.c.b16 %v665, %v661
    %v710 = vpack.c.b16 %v666, %v662
    %v711 = vpack.c.b16 %v667, %v663
    %v712 = vpack.c.b16 %v668, %v664
    %v713 = vpack.c.b16 %v673, %v669
    %v714 = vpack.c.b16 %v674, %v670
    %v715 = vpack.c.b16 %v675, %v671
    %v716 = vpack.c.b16 %v676, %v672
    %v717 = vpack.c.b16 %v681, %v677
    %v718 = vpack.c.b16 %v682, %v678
    %v719 = vpack.c.b16 %v683, %v679
    %v720 = vpack.c.b16 %v684, %v680
    %v721 = vpack.c.b16 %v689, %v685
    %v722 = vpack.c.b16 %v690, %v686
    %v723 = vpack.c.b16 %v691, %v687
    %v724 = vpack.c.b16 %v692, %v688
    %757 = vmatpush.bf16.msra.mxu0 %v721
    %758 = vmatpush.bf16.msra.mxu0 %v717
    %759 = vmatpush.bf16.msra.mxu0 %v713
    %760 = vmatpush.bf16.msra.mxu0 %v709
    %761 = vmatpush.bf16.msra.mxu0 %v705
    %762 = vmatpush.bf16.msra.mxu0 %v701
    %763 = vmatpush.bf16.msra.mxu0 %v697
    %764 = vmatpush.bf16.msra.mxu0 %v693
    %765 = vmatmul.bf16.gmra.mxu0 0
    %v766 = vpop.f32.mrf.mxu0
    %v767 = vadd.f32 0.0, %v766
    %v768 = vpop.f32.mrf.mxu0
    %v769 = vadd.f32 0.0, %v768
    %770 = vdwg.mxu0
    %771 = vmatpush.bf16.msra.mxu0 %v722
    %772 = vmatpush.bf16.msra.mxu0 %v718
    %773 = vmatpush.bf16.msra.mxu0 %v714
    %774 = vmatpush.bf16.msra.mxu0 %v710
    %775 = vmatpush.bf16.msra.mxu0 %v706
    %776 = vmatpush.bf16.msra.mxu0 %v702
    %777 = vmatpush.bf16.msra.mxu0 %v698
    %778 = vmatpush.bf16.msra.mxu0 %v694
    %779 = vmatmul.bf16.gmra.mxu0 0
    %v780 = vpop.f32.mrf.mxu0
    %v781 = vadd.f32 0.0, %v780
    %v782 = vpop.f32.mrf.mxu0
    %v783 = vadd.f32 0.0, %v782
    %784 = vdwg.mxu0
    %785 = vmatpush.bf16.msra.mxu0 %v723
    %786 = vmatpush.bf16.msra.mxu0 %v719
    %787 = vmatpush.bf16.msra.mxu0 %v715
    %788 = vmatpush.bf16.msra.mxu0 %v711
    %789 = vmatpush.bf16.msra.mxu0 %v707
    %790 = vmatpush.bf16.msra.mxu0 %v703
    %791 = vmatpush.bf16.msra.mxu0 %v699
    %792 = vmatpush.bf16.msra.mxu0 %v695
    %793 = vmatmul.bf16.gmra.mxu0 0
    %v794 = vpop.f32.mrf.mxu0
    %v795 = vadd.f32 0.0, %v794
    %v796 = vpop.f32.mrf.mxu0
    %v797 = vadd.f32 0.0, %v796
    %798 = vdwg.mxu0
    %799 = vmatpush.bf16.msra.mxu0 %v724
    %800 = vmatpush.bf16.msra.mxu0 %v720
    %801 = vmatpush.bf16.msra.mxu0 %v716
    %802 = vmatpush.bf16.msra.mxu0 %v712
    %803 = vmatpush.bf16.msra.mxu0 %v708
    %804 = vmatpush.bf16.msra.mxu0 %v704
    %805 = vmatpush.bf16.msra.mxu0 %v700
    %806 = vmatpush.bf16.msra.mxu0 %v696
    %807 = vmatmul.bf16.gmra.mxu0 0
    %v808 = vpop.f32.mrf.mxu0
    %v809 = vadd.f32 0.0, %v808
    %v810 = vpop.f32.mrf.mxu0
    %v811 = vadd.f32 0.0, %v810
    %812 = vdwg.mxu0
    %v813 = vadd.f32 %v589, %v767
    %v814 = vadd.f32 %v590, %v781
    %v815 = vadd.f32 %v591, %v795
    %v816 = vadd.f32 %v592, %v809
    %v817 = vadd.f32 %v593, %v769
    %v818 = vadd.f32 %v594, %v783
    %v819 = vadd.f32 %v595, %v797
    %v820 = vadd.f32 %v596, %v811
    %v821 = vmul.f32 %v813, 0.5
    %v822 = vmul.f32 %v817, 0.5
    %v823 = vtanh.pop %v821
    %v824 = vtanh.pop %v822
    %v825 = vmul.f32 %v823, 0.5
    %v826 = vmul.f32 %v824, 0.5
    %v827 = vadd.f32 %v825, 0.5
    %v828 = vadd.f32 %v826, 0.5
    %v829 = vmul.f32 %v814, 0.5
    %v830 = vmul.f32 %v818, 0.5
    %v831 = vtanh.pop %v829
    %v832 = vtanh.pop %v830
    %v833 = vmul.f32 %v831, 0.5
    %v834 = vmul.f32 %v832, 0.5
    %v835 = vadd.f32 %v833, 0.5
    %v836 = vadd.f32 %v834, 0.5
    %v837 = vtanh.pop %v815
    %v838 = vtanh.pop %v819
    %v839 = vmul.f32 %v816, 0.5
    %v840 = vmul.f32 %v820, 0.5
    %v841 = vtanh.pop %v839
    %v842 = vtanh.pop %v840
    %v843 = vmul.f32 %v841, 0.5
    %v844 = vmul.f32 %v842, 0.5
    %v845 = vadd.f32 %v843, 0.5
    %v846 = vadd.f32 %v844, 0.5
    %v847 = vmul.f32 %v835, 0.0
    %v848 = vmul.f32 %v836, 0.0
    %v849 = vmul.f32 %v827, %v837
    %v850 = vmul.f32 %v828, %v838
    %v851 = vadd.f32 %v847, %v849
    %v852 = vadd.f32 %v848, %v850
    %v853 = vtanh.pop %v851
    %v854 = vtanh.pop %v852
    %v855 = vmul.f32 %v845, %v853
    %v856 = vmul.f32 %v846, %v854
    %v857 = vld [vmem:[#allocation2 + $0x40] sm:$0xff]
    %v858 = vld [vmem:[#allocation2 + $0x48] sm:$0xff]
    %v859 = vld [vmem:[#allocation2 + $0x50] sm:$0xff]
    %v860 = vld [vmem:[#allocation2 + $0x58] sm:$0xff]
    %v861 = vld [vmem:[#allocation2 + $0x60] sm:$0xff]
    %v862 = vld [vmem:[#allocation2 + $0x68] sm:$0xff]
    %v863 = vld [vmem:[#allocation2 + $0x70] sm:$0xff]
    %v864 = vld [vmem:[#allocation2 + $0x78] sm:$0xff]
    %v865 = vpack.c.bf16 %v856, %v855
    %866 = vmatpush.bf16.msra.mxu0 %v721
    %867 = vmatpush.bf16.msra.mxu0 %v717
    %868 = vmatpush.bf16.msra.mxu0 %v713
    %869 = vmatpush.bf16.msra.mxu0 %v709
    %870 = vmatpush.bf16.msra.mxu0 %v705
    %871 = vmatpush.bf16.msra.mxu0 %v701
    %872 = vmatpush.bf16.msra.mxu0 %v697
    %873 = vmatpush.bf16.msra.mxu0 %v693
    %874 = vmatmul.bf16.gmra.mxu0 %v865
    %v875 = vpop.f32.mrf.mxu0
    %v876 = vadd.f32 0.0, %v875
    %v877 = vpop.f32.mrf.mxu0
    %v878 = vadd.f32 0.0, %v877
    %879 = vdwg.mxu0
    %880 = vmatpush.bf16.msra.mxu0 %v722
    %881 = vmatpush.bf16.msra.mxu0 %v718
    %882 = vmatpush.bf16.msra.mxu0 %v714
    %883 = vmatpush.bf16.msra.mxu0 %v710
    %884 = vmatpush.bf16.msra.mxu0 %v706
    %885 = vmatpush.bf16.msra.mxu0 %v702
    %886 = vmatpush.bf16.msra.mxu0 %v698
    %887 = vmatpush.bf16.msra.mxu0 %v694
    %888 = vmatmul.bf16.gmra.mxu0 %v865
    %v889 = vpop.f32.mrf.mxu0
    %v890 = vadd.f32 0.0, %v889
    %v891 = vpop.f32.mrf.mxu0
    %v892 = vadd.f32 0.0, %v891
    %893 = vdwg.mxu0
    %894 = vmatpush.bf16.msra.mxu0 %v723
    %895 = vmatpush.bf16.msra.mxu0 %v719
    %896 = vmatpush.bf16.msra.mxu0 %v715
    %897 = vmatpush.bf16.msra.mxu0 %v711
    %898 = vmatpush.bf16.msra.mxu0 %v707
    %899 = vmatpush.bf16.msra.mxu0 %v703
    %900 = vmatpush.bf16.msra.mxu0 %v699
    %901 = vmatpush.bf16.msra.mxu0 %v695
    %902 = vmatmul.bf16.gmra.mxu0 %v865
    %v903 = vpop.f32.mrf.mxu0
    %v904 = vadd.f32 0.0, %v903
    %v905 = vpop.f32.mrf.mxu0
    %v906 = vadd.f32 0.0, %v905
    %907 = vdwg.mxu0
    %908 = vmatpush.bf16.msra.mxu0 %v724
    %909 = vmatpush.bf16.msra.mxu0 %v720
    %910 = vmatpush.bf16.msra.mxu0 %v716
    %911 = vmatpush.bf16.msra.mxu0 %v712
    %912 = vmatpush.bf16.msra.mxu0 %v708
    %913 = vmatpush.bf16.msra.mxu0 %v704
    %914 = vmatpush.bf16.msra.mxu0 %v700
    %915 = vmatpush.bf16.msra.mxu0 %v696
    %916 = vmatmul.bf16.gmra.mxu0 %v865
    %v917 = vpop.f32.mrf.mxu0
    %v918 = vadd.f32 0.0, %v917
    %v919 = vpop.f32.mrf.mxu0
    %v920 = vadd.f32 0.0, %v919
    %921 = vdwg.mxu0
    %v922 = vadd.f32 %v857, %v876
    %v923 = vadd.f32 %v858, %v890
    %v924 = vadd.f32 %v859, %v904
    %v925 = vadd.f32 %v860, %v918
    %v926 = vadd.f32 %v861, %v878
    %v927 = vadd.f32 %v862, %v892
    %v928 = vadd.f32 %v863, %v906
    %v929 = vadd.f32 %v864, %v920
    %v930 = vmul.f32 %v922, 0.5
    %v931 = vmul.f32 %v926, 0.5
    %v932 = vtanh.pop %v930
    %v933 = vtanh.pop %v931
    %v934 = vmul.f32 %v932, 0.5
    %v935 = vmul.f32 %v933, 0.5
    %v936 = vadd.f32 %v934, 0.5
    %v937 = vadd.f32 %v935, 0.5
    %v938 = vmul.f32 %v923, 0.5
    %v939 = vmul.f32 %v927, 0.5
    %v940 = vtanh.pop %v938
    %v941 = vtanh.pop %v939
    %v942 = vmul.f32 %v940, 0.5
    %v943 = vmul.f32 %v941, 0.5
    %v944 = vadd.f32 %v942, 0.5
    %v945 = vadd.f32 %v943, 0.5
    %v946 = vtanh.pop %v924
    %v947 = vtanh.pop %v928
    %v948 = vmul.f32 %v925, 0.5
    %v949 = vmul.f32 %v929, 0.5
    %v950 = vtanh.pop %v948
    %v951 = vtanh.pop %v949
    %v952 = vmul.f32 %v950, 0.5
    %v953 = vmul.f32 %v951, 0.5
    %v954 = vadd.f32 %v952, 0.5
    %v955 = vadd.f32 %v953, 0.5
    %v956 = vmul.f32 %v944, %v851
    %v957 = vmul.f32 %v945, %v852
    %v958 = vmul.f32 %v936, %v946
    %v959 = vmul.f32 %v937, %v947
    %v960 = vadd.f32 %v956, %v958
    %v961 = vadd.f32 %v957, %v959
    %v962 = vtanh.pop %v960
    %v963 = vtanh.pop %v961
    %v964 = vmul.f32 %v954, %v962
    %v965 = vmul.f32 %v955, %v963
    %v966 = vld [vmem:[#allocation2 + $0x80] sm:$0xff]
    %v967 = vld [vmem:[#allocation2 + $0x88] sm:$0xff]
    %v968 = vld [vmem:[#allocation2 + $0x90] sm:$0xff]
    %v969 = vld [vmem:[#allocation2 + $0x98] sm:$0xff]
    %v970 = vld [vmem:[#allocation2 + $0xa0] sm:$0xff]
    %v971 = vld [vmem:[#allocation2 + $0xa8] sm:$0xff]
    %v972 = vld [vmem:[#allocation2 + $0xb0] sm:$0xff]
    %v973 = vld [vmem:[#allocation2 + $0xb8] sm:$0xff]
    %v974 = vpack.c.bf16 %v965, %v964
    %975 = vmatpush.bf16.msra.mxu0 %v721
    %976 = vmatpush.bf16.msra.mxu0 %v717
    %977 = vmatpush.bf16.msra.mxu0 %v713
    %978 = vmatpush.bf16.msra.mxu0 %v709
    %979 = vmatpush.bf16.msra.mxu0 %v705
    %980 = vmatpush.bf16.msra.mxu0 %v701
    %981 = vmatpush.bf16.msra.mxu0 %v697
    %982 = vmatpush.bf16.msra.mxu0 %v693
    %983 = vmatmul.bf16.gmra.mxu0 %v974
    %v984 = vpop.f32.mrf.mxu0
    %v985 = vadd.f32 0.0, %v984
    %v986 = vpop.f32.mrf.mxu0
    %v987 = vadd.f32 0.0, %v986
    %988 = vdwg.mxu0
    %989 = vmatpush.bf16.msra.mxu0 %v722
    %990 = vmatpush.bf16.msra.mxu0 %v718
    %991 = vmatpush.bf16.msra.mxu0 %v714
    %992 = vmatpush.bf16.msra.mxu0 %v710
    %993 = vmatpush.bf16.msra.mxu0 %v706
    %994 = vmatpush.bf16.msra.mxu0 %v702
    %995 = vmatpush.bf16.msra.mxu0 %v698
    %996 = vmatpush.bf16.msra.mxu0 %v694
    %997 = vmatmul.bf16.gmra.mxu0 %v974
    %v998 = vpop.f32.mrf.mxu0
    %v999 = vadd.f32 0.0, %v998
    %v1000 = vpop.f32.mrf.mxu0
    %v1001 = vadd.f32 0.0, %v1000
    %1002 = vdwg.mxu0
    %1003 = vmatpush.bf16.msra.mxu0 %v723
    %1004 = vmatpush.bf16.msra.mxu0 %v719
    %1005 = vmatpush.bf16.msra.mxu0 %v715
    %1006 = vmatpush.bf16.msra.mxu0 %v711
    %1007 = vmatpush.bf16.msra.mxu0 %v707
    %1008 = vmatpush.bf16.msra.mxu0 %v703
    %1009 = vmatpush.bf16.msra.mxu0 %v699
    %1010 = vmatpush.bf16.msra.mxu0 %v695
    %1011 = vmatmul.bf16.gmra.mxu0 %v974
    %v1012 = vpop.f32.mrf.mxu0
    %v1013 = vadd.f32 0.0, %v1012
    %v1014 = vpop.f32.mrf.mxu0
    %v1015 = vadd.f32 0.0, %v1014
    %1016 = vdwg.mxu0
    %1017 = vmatpush.bf16.msra.mxu0 %v724
    %1018 = vmatpush.bf16.msra.mxu0 %v720
    %1019 = vmatpush.bf16.msra.mxu0 %v716
    %1020 = vmatpush.bf16.msra.mxu0 %v712
    %1021 = vmatpush.bf16.msra.mxu0 %v708
    %1022 = vmatpush.bf16.msra.mxu0 %v704
    %1023 = vmatpush.bf16.msra.mxu0 %v700
    %1024 = vmatpush.bf16.msra.mxu0 %v696
    %1025 = vmatmul.bf16.gmra.mxu0 %v974
    %v1026 = vpop.f32.mrf.mxu0
    %v1027 = vadd.f32 0.0, %v1026
    %v1028 = vpop.f32.mrf.mxu0
    %v1029 = vadd.f32 0.0, %v1028
    %1030 = vdwg.mxu0
    %v1031 = vadd.f32 %v966, %v985
    %v1032 = vadd.f32 %v967, %v999
    %v1033 = vadd.f32 %v968, %v1013
    %v1034 = vadd.f32 %v969, %v1027
    %v1035 = vadd.f32 %v970, %v987
    %v1036 = vadd.f32 %v971, %v1001
    %v1037 = vadd.f32 %v972, %v1015
    %v1038 = vadd.f32 %v973, %v1029
    %v1039 = vmul.f32 %v1031, 0.5
    %v1040 = vmul.f32 %v1035, 0.5
    %v1041 = vtanh.pop %v1039
    %v1042 = vtanh.pop %v1040
    %v1043 = vmul.f32 %v1041, 0.5
    %v1044 = vmul.f32 %v1042, 0.5
    %v1045 = vadd.f32 %v1043, 0.5
    %v1046 = vadd.f32 %v1044, 0.5
    %v1047 = vmul.f32 %v1032, 0.5
    %v1048 = vmul.f32 %v1036, 0.5
    %v1049 = vtanh.pop %v1047
    %v1050 = vtanh.pop %v1048
    %v1051 = vmul.f32 %v1049, 0.5
    %v1052 = vmul.f32 %v1050, 0.5
    %v1053 = vadd.f32 %v1051, 0.5
    %v1054 = vadd.f32 %v1052, 0.5
    %v1055 = vtanh.pop %v1033
    %v1056 = vtanh.pop %v1037
    %v1057 = vmul.f32 %v1034, 0.5
    %v1058 = vmul.f32 %v1038, 0.5
    %v1059 = vtanh.pop %v1057
    %v1060 = vtanh.pop %v1058
    %v1061 = vmul.f32 %v1059, 0.5
    %v1062 = vmul.f32 %v1060, 0.5
    %v1063 = vadd.f32 %v1061, 0.5
    %v1064 = vadd.f32 %v1062, 0.5
    %v1065 = vmul.f32 %v1053, %v960
    %v1066 = vmul.f32 %v1054, %v961
    %v1067 = vmul.f32 %v1045, %v1055
    %v1068 = vmul.f32 %v1046, %v1056
    %v1069 = vadd.f32 %v1065, %v1067
    %v1070 = vadd.f32 %v1066, %v1068
    %v1071 = vtanh.pop %v1069
    %v1072 = vtanh.pop %v1070
    %v1073 = vmul.f32 %v1063, %v1071
    %v1074 = vmul.f32 %v1064, %v1072
    %v1075 = vld [vmem:[#allocation2 + $0xc0] sm:$0xff]
    %v1076 = vld [vmem:[#allocation2 + $0xc8] sm:$0xff]
    %v1077 = vld [vmem:[#allocation2 + $0xd0] sm:$0xff]
    %v1078 = vld [vmem:[#allocation2 + $0xd8] sm:$0xff]
    %v1079 = vld [vmem:[#allocation2 + $0xe0] sm:$0xff]
    %v1080 = vld [vmem:[#allocation2 + $0xe8] sm:$0xff]
    %v1081 = vld [vmem:[#allocation2 + $0xf0] sm:$0xff]
    %v1082 = vld [vmem:[#allocation2 + $0xf8] sm:$0xff]
    %v1083 = vpack.c.bf16 %v1074, %v1073
    %1084 = vmatpush.bf16.msra.mxu0 %v721
    %1085 = vmatpush.bf16.msra.mxu0 %v717
    %1086 = vmatpush.bf16.msra.mxu0 %v713
    %1087 = vmatpush.bf16.msra.mxu0 %v709
    %1088 = vmatpush.bf16.msra.mxu0 %v705
    %1089 = vmatpush.bf16.msra.mxu0 %v701
    %1090 = vmatpush.bf16.msra.mxu0 %v697
    %1091 = vmatpush.bf16.msra.mxu0 %v693
    %1092 = vmatmul.bf16.gmra.mxu0 %v1083
    %v1093 = vpop.f32.mrf.mxu0
    %v1094 = vadd.f32 0.0, %v1093
    %v1095 = vpop.f32.mrf.mxu0
    %v1096 = vadd.f32 0.0, %v1095
    %1097 = vdwg.mxu0
    %1098 = vmatpush.bf16.msra.mxu0 %v722
    %1099 = vmatpush.bf16.msra.mxu0 %v718
    %1100 = vmatpush.bf16.msra.mxu0 %v714
    %1101 = vmatpush.bf16.msra.mxu0 %v710
    %1102 = vmatpush.bf16.msra.mxu0 %v706
    %1103 = vmatpush.bf16.msra.mxu0 %v702
    %1104 = vmatpush.bf16.msra.mxu0 %v698
    %1105 = vmatpush.bf16.msra.mxu0 %v694
    %1106 = vmatmul.bf16.gmra.mxu0 %v1083
    %v1107 = vpop.f32.mrf.mxu0
    %v1108 = vadd.f32 0.0, %v1107
    %v1109 = vpop.f32.mrf.mxu0
    %v1110 = vadd.f32 0.0, %v1109
    %1111 = vdwg.mxu0
    %1112 = vmatpush.bf16.msra.mxu0 %v723
    %1113 = vmatpush.bf16.msra.mxu0 %v719
    %1114 = vmatpush.bf16.msra.mxu0 %v715
    %1115 = vmatpush.bf16.msra.mxu0 %v711
    %1116 = vmatpush.bf16.msra.mxu0 %v707
    %1117 = vmatpush.bf16.msra.mxu0 %v703
    %1118 = vmatpush.bf16.msra.mxu0 %v699
    %1119 = vmatpush.bf16.msra.mxu0 %v695
    %1120 = vmatmul.bf16.gmra.mxu0 %v1083
    %v1121 = vpop.f32.mrf.mxu0
    %v1122 = vadd.f32 0.0, %v1121
    %v1123 = vpop.f32.mrf.mxu0
    %v1124 = vadd.f32 0.0, %v1123
    %1125 = vdwg.mxu0
    %1126 = vmatpush.bf16.msra.mxu0 %v724
    %1127 = vmatpush.bf16.msra.mxu0 %v720
    %1128 = vmatpush.bf16.msra.mxu0 %v716
    %1129 = vmatpush.bf16.msra.mxu0 %v712
    %1130 = vmatpush.bf16.msra.mxu0 %v708
    %1131 = vmatpush.bf16.msra.mxu0 %v704
    %1132 = vmatpush.bf16.msra.mxu0 %v700
    %1133 = vmatpush.bf16.msra.mxu0 %v696
    %1134 = vmatmul.bf16.gmra.mxu0 %v1083
    %v1135 = vpop.f32.mrf.mxu0
    %v1136 = vadd.f32 0.0, %v1135
    %v1137 = vpop.f32.mrf.mxu0
    %v1138 = vadd.f32 0.0, %v1137
    %1139 = vdwg.mxu0
    %v1140 = vadd.f32 %v1075, %v1094
    %v1141 = vadd.f32 %v1076, %v1108
    %v1142 = vadd.f32 %v1077, %v1122
    %v1143 = vadd.f32 %v1078, %v1136
    %v1144 = vadd.f32 %v1079, %v1096
    %v1145 = vadd.f32 %v1080, %v1110
    %v1146 = vadd.f32 %v1081, %v1124
    %v1147 = vadd.f32 %v1082, %v1138
    %v1148 = vmul.f32 %v1140, 0.5
    %v1149 = vmul.f32 %v1144, 0.5
    %v1150 = vtanh.pop %v1148
    %v1151 = vtanh.pop %v1149
    %v1152 = vmul.f32 %v1150, 0.5
    %v1153 = vmul.f32 %v1151, 0.5
    %v1154 = vadd.f32 %v1152, 0.5
    %v1155 = vadd.f32 %v1153, 0.5
    %v1156 = vmul.f32 %v1141, 0.5
    %v1157 = vmul.f32 %v1145, 0.5
    %v1158 = vtanh.pop %v1156
    %v1159 = vtanh.pop %v1157
    %v1160 = vmul.f32 %v1158, 0.5
    %v1161 = vmul.f32 %v1159, 0.5
    %v1162 = vadd.f32 %v1160, 0.5
    %v1163 = vadd.f32 %v1161, 0.5
    %v1164 = vtanh.pop %v1142
    %v1165 = vtanh.pop %v1146
    %v1166 = vmul.f32 %v1143, 0.5
    %v1167 = vmul.f32 %v1147, 0.5
    %v1168 = vtanh.pop %v1166
    %v1169 = vtanh.pop %v1167
    %v1170 = vmul.f32 %v1168, 0.5
    %v1171 = vmul.f32 %v1169, 0.5
    %v1172 = vadd.f32 %v1170, 0.5
    %v1173 = vadd.f32 %v1171, 0.5
    %v1174 = vmul.f32 %v1162, %v1069
    %v1175 = vmul.f32 %v1163, %v1070
    %v1176 = vmul.f32 %v1154, %v1164
    %v1177 = vmul.f32 %v1155, %v1165
    %v1178 = vadd.f32 %v1174, %v1176
    %v1179 = vadd.f32 %v1175, %v1177
    %v1180 = vtanh.pop %v1178
    %v1181 = vtanh.pop %v1179
    %v1182 = vmul.f32 %v1172, %v1180
    %v1183 = vmul.f32 %v1173, %v1181
    %v1184 = vld [vmem:[#allocation2 + $0x100] sm:$0xff]
    %v1185 = vld [vmem:[#allocation2 + $0x108] sm:$0xff]
    %v1186 = vld [vmem:[#allocation2 + $0x110] sm:$0xff]
    %v1187 = vld [vmem:[#allocation2 + $0x118] sm:$0xff]
    %v1188 = vld [vmem:[#allocation2 + $0x120] sm:$0xff]
    %v1189 = vld [vmem:[#allocation2 + $0x128] sm:$0xff]
    %v1190 = vld [vmem:[#allocation2 + $0x130] sm:$0xff]
    %v1191 = vld [vmem:[#allocation2 + $0x138] sm:$0xff]
    %v1192 = vpack.c.bf16 %v1183, %v1182
    %1193 = vmatpush.bf16.msra.mxu0 %v721
    %1194 = vmatpush.bf16.msra.mxu0 %v717
    %1195 = vmatpush.bf16.msra.mxu0 %v713
    %1196 = vmatpush.bf16.msra.mxu0 %v709
    %1197 = vmatpush.bf16.msra.mxu0 %v705
    %1198 = vmatpush.bf16.msra.mxu0 %v701
    %1199 = vmatpush.bf16.msra.mxu0 %v697
    %1200 = vmatpush.bf16.msra.mxu0 %v693
    %1201 = vmatmul.bf16.gmra.mxu0 %v1192
    %v1202 = vpop.f32.mrf.mxu0
    %v1203 = vadd.f32 0.0, %v1202
    %v1204 = vpop.f32.mrf.mxu0
    %v1205 = vadd.f32 0.0, %v1204
    %1206 = vdwg.mxu0
    %1207 = vmatpush.bf16.msra.mxu0 %v722
    %1208 = vmatpush.bf16.msra.mxu0 %v718
    %1209 = vmatpush.bf16.msra.mxu0 %v714
    %1210 = vmatpush.bf16.msra.mxu0 %v710
    %1211 = vmatpush.bf16.msra.mxu0 %v706
    %1212 = vmatpush.bf16.msra.mxu0 %v702
    %1213 = vmatpush.bf16.msra.mxu0 %v698
    %1214 = vmatpush.bf16.msra.mxu0 %v694
    %1215 = vmatmul.bf16.gmra.mxu0 %v1192
    %v1216 = vpop.f32.mrf.mxu0
    %v1217 = vadd.f32 0.0, %v1216
    %v1218 = vpop.f32.mrf.mxu0
    %v1219 = vadd.f32 0.0, %v1218
    %1220 = vdwg.mxu0
    %1221 = vmatpush.bf16.msra.mxu0 %v723
    %1222 = vmatpush.bf16.msra.mxu0 %v719
    %1223 = vmatpush.bf16.msra.mxu0 %v715
    %1224 = vmatpush.bf16.msra.mxu0 %v711
    %1225 = vmatpush.bf16.msra.mxu0 %v707
    %1226 = vmatpush.bf16.msra.mxu0 %v703
    %1227 = vmatpush.bf16.msra.mxu0 %v699
    %1228 = vmatpush.bf16.msra.mxu0 %v695
    %1229 = vmatmul.bf16.gmra.mxu0 %v1192
    %v1230 = vpop.f32.mrf.mxu0
    %v1231 = vadd.f32 0.0, %v1230
    %v1232 = vpop.f32.mrf.mxu0
    %v1233 = vadd.f32 0.0, %v1232
    %1234 = vdwg.mxu0
    %1235 = vmatpush.bf16.msra.mxu0 %v724
    %1236 = vmatpush.bf16.msra.mxu0 %v720
    %1237 = vmatpush.bf16.msra.mxu0 %v716
    %1238 = vmatpush.bf16.msra.mxu0 %v712
    %1239 = vmatpush.bf16.msra.mxu0 %v708
    %1240 = vmatpush.bf16.msra.mxu0 %v704
    %1241 = vmatpush.bf16.msra.mxu0 %v700
    %1242 = vmatpush.bf16.msra.mxu0 %v696
    %1243 = vmatmul.bf16.gmra.mxu0 %v1192
    %v1244 = vpop.f32.mrf.mxu0
    %v1245 = vadd.f32 0.0, %v1244
    %v1246 = vpop.f32.mrf.mxu0
    %v1247 = vadd.f32 0.0, %v1246
    %1248 = vdwg.mxu0
    %v1249 = vadd.f32 %v1184, %v1203
    %v1250 = vadd.f32 %v1185, %v1217
    %v1251 = vadd.f32 %v1186, %v1231
    %v1252 = vadd.f32 %v1187, %v1245
    %v1253 = vadd.f32 %v1188, %v1205
    %v1254 = vadd.f32 %v1189, %v1219
    %v1255 = vadd.f32 %v1190, %v1233
    %v1256 = vadd.f32 %v1191, %v1247
    %v1257 = vmul.f32 %v1249, 0.5
    %v1258 = vmul.f32 %v1253, 0.5
    %v1259 = vtanh.pop %v1257
    %v1260 = vtanh.pop %v1258
    %v1261 = vmul.f32 %v1259, 0.5
    %v1262 = vmul.f32 %v1260, 0.5
    %v1263 = vadd.f32 %v1261, 0.5
    %v1264 = vadd.f32 %v1262, 0.5
    %v1265 = vmul.f32 %v1250, 0.5
    %v1266 = vmul.f32 %v1254, 0.5
    %v1267 = vtanh.pop %v1265
    %v1268 = vtanh.pop %v1266
    %v1269 = vmul.f32 %v1267, 0.5
    %v1270 = vmul.f32 %v1268, 0.5
    %v1271 = vadd.f32 %v1269, 0.5
    %v1272 = vadd.f32 %v1270, 0.5
    %v1273 = vtanh.pop %v1251
    %v1274 = vtanh.pop %v1255
    %v1275 = vmul.f32 %v1252, 0.5
    %v1276 = vmul.f32 %v1256, 0.5
    %v1277 = vtanh.pop %v1275
    %v1278 = vtanh.pop %v1276
    %v1279 = vmul.f32 %v1277, 0.5
    %v1280 = vmul.f32 %v1278, 0.5
    %v1281 = vadd.f32 %v1279, 0.5
    %v1282 = vadd.f32 %v1280, 0.5
    %v1283 = vmul.f32 %v1271, %v1178
    %v1284 = vmul.f32 %v1272, %v1179
    %v1285 = vmul.f32 %v1263, %v1273
    %v1286 = vmul.f32 %v1264, %v1274
    %v1287 = vadd.f32 %v1283, %v1285
    %v1288 = vadd.f32 %v1284, %v1286
    %v1289 = vtanh.pop %v1287
    %v1290 = vtanh.pop %v1288
    %v1291 = vmul.f32 %v1281, %v1289
    %v1292 = vmul.f32 %v1282, %v1290
    %v1293 = vld [vmem:[#allocation2 + $0x140] sm:$0xff]
    %v1294 = vld [vmem:[#allocation2 + $0x148] sm:$0xff]
    %v1295 = vld [vmem:[#allocation2 + $0x150] sm:$0xff]
    %v1296 = vld [vmem:[#allocation2 + $0x158] sm:$0xff]
    %v1297 = vld [vmem:[#allocation2 + $0x160] sm:$0xff]
    %v1298 = vld [vmem:[#allocation2 + $0x168] sm:$0xff]
    %v1299 = vld [vmem:[#allocation2 + $0x170] sm:$0xff]
    %v1300 = vld [vmem:[#allocation2 + $0x178] sm:$0xff]
    %v1301 = vpack.c.bf16 %v1292, %v1291
    %1302 = vmatpush.bf16.msra.mxu0 %v721
    %1303 = vmatpush.bf16.msra.mxu0 %v717
    %1304 = vmatpush.bf16.msra.mxu0 %v713
    %1305 = vmatpush.bf16.msra.mxu0 %v709
    %1306 = vmatpush.bf16.msra.mxu0 %v705
    %1307 = vmatpush.bf16.msra.mxu0 %v701
    %1308 = vmatpush.bf16.msra.mxu0 %v697
    %1309 = vmatpush.bf16.msra.mxu0 %v693
    %1310 = vmatmul.bf16.gmra.mxu0 %v1301
    %v1311 = vpop.f32.mrf.mxu0
    %v1312 = vadd.f32 0.0, %v1311
    %v1313 = vpop.f32.mrf.mxu0
    %v1314 = vadd.f32 0.0, %v1313
    %1315 = vdwg.mxu0
    %1316 = vmatpush.bf16.msra.mxu0 %v722
    %1317 = vmatpush.bf16.msra.mxu0 %v718
    %1318 = vmatpush.bf16.msra.mxu0 %v714
    %1319 = vmatpush.bf16.msra.mxu0 %v710
    %1320 = vmatpush.bf16.msra.mxu0 %v706
    %1321 = vmatpush.bf16.msra.mxu0 %v702
    %1322 = vmatpush.bf16.msra.mxu0 %v698
    %1323 = vmatpush.bf16.msra.mxu0 %v694
    %1324 = vmatmul.bf16.gmra.mxu0 %v1301
    %v1325 = vpop.f32.mrf.mxu0
    %v1326 = vadd.f32 0.0, %v1325
    %v1327 = vpop.f32.mrf.mxu0
    %v1328 = vadd.f32 0.0, %v1327
    %1329 = vdwg.mxu0
    %1330 = vmatpush.bf16.msra.mxu0 %v723
    %1331 = vmatpush.bf16.msra.mxu0 %v719
    %1332 = vmatpush.bf16.msra.mxu0 %v715
    %1333 = vmatpush.bf16.msra.mxu0 %v711
    %1334 = vmatpush.bf16.msra.mxu0 %v707
    %1335 = vmatpush.bf16.msra.mxu0 %v703
    %1336 = vmatpush.bf16.msra.mxu0 %v699
    %1337 = vmatpush.bf16.msra.mxu0 %v695
    %1338 = vmatmul.bf16.gmra.mxu0 %v1301
    %v1339 = vpop.f32.mrf.mxu0
    %v1340 = vadd.f32 0.0, %v1339
    %v1341 = vpop.f32.mrf.mxu0
    %v1342 = vadd.f32 0.0, %v1341
    %1343 = vdwg.mxu0
    %1344 = vmatpush.bf16.msra.mxu0 %v724
    %1345 = vmatpush.bf16.msra.mxu0 %v720
    %1346 = vmatpush.bf16.msra.mxu0 %v716
    %1347 = vmatpush.bf16.msra.mxu0 %v712
    %1348 = vmatpush.bf16.msra.mxu0 %v708
    %1349 = vmatpush.bf16.msra.mxu0 %v704
    %1350 = vmatpush.bf16.msra.mxu0 %v700
    %1351 = vmatpush.bf16.msra.mxu0 %v696
    %1352 = vmatmul.bf16.gmra.mxu0 %v1301
    %v1353 = vpop.f32.mrf.mxu0
    %v1354 = vadd.f32 0.0, %v1353
    %v1355 = vpop.f32.mrf.mxu0
    %v1356 = vadd.f32 0.0, %v1355
    %1357 = vdwg.mxu0
    %v1358 = vadd.f32 %v1293, %v1312
    %v1359 = vadd.f32 %v1294, %v1326
    %v1360 = vadd.f32 %v1295, %v1340
    %v1361 = vadd.f32 %v1296, %v1354
    %v1362 = vadd.f32 %v1297, %v1314
    %v1363 = vadd.f32 %v1298, %v1328
    %v1364 = vadd.f32 %v1299, %v1342
    %v1365 = vadd.f32 %v1300, %v1356
    %v1366 = vmul.f32 %v1358, 0.5
    %v1367 = vmul.f32 %v1362, 0.5
    %v1368 = vtanh.pop %v1366
    %v1369 = vtanh.pop %v1367
    %v1370 = vmul.f32 %v1368, 0.5
    %v1371 = vmul.f32 %v1369, 0.5
    %v1372 = vadd.f32 %v1370, 0.5
    %v1373 = vadd.f32 %v1371, 0.5
    %v1374 = vmul.f32 %v1359, 0.5
    %v1375 = vmul.f32 %v1363, 0.5
    %v1376 = vtanh.pop %v1374
    %v1377 = vtanh.pop %v1375
    %v1378 = vmul.f32 %v1376, 0.5
    %v1379 = vmul.f32 %v1377, 0.5
    %v1380 = vadd.f32 %v1378, 0.5
    %v1381 = vadd.f32 %v1379, 0.5
    %v1382 = vtanh.pop %v1360
    %v1383 = vtanh.pop %v1364
    %v1384 = vmul.f32 %v1361, 0.5
    %v1385 = vmul.f32 %v1365, 0.5
    %v1386 = vtanh.pop %v1384
    %v1387 = vtanh.pop %v1385
    %v1388 = vmul.f32 %v1386, 0.5
    %v1389 = vmul.f32 %v1387, 0.5
    %v1390 = vadd.f32 %v1388, 0.5
    %v1391 = vadd.f32 %v1389, 0.5
    %v1392 = vmul.f32 %v1380, %v1287
    %v1393 = vmul.f32 %v1381, %v1288
    %v1394 = vmul.f32 %v1372, %v1382
    %v1395 = vmul.f32 %v1373, %v1383
    %v1396 = vadd.f32 %v1392, %v1394
    %v1397 = vadd.f32 %v1393, %v1395
    %v1398 = vtanh.pop %v1396
    %v1399 = vtanh.pop %v1397
    %v1400 = vmul.f32 %v1390, %v1398
    %v1401 = vmul.f32 %v1391, %v1399
    %v1402 = vld [vmem:[#allocation2 + $0x180] sm:$0xff]
    %v1403 = vld [vmem:[#allocation2 + $0x188] sm:$0xff]
    %v1404 = vld [vmem:[#allocation2 + $0x190] sm:$0xff]
    %v1405 = vld [vmem:[#allocation2 + $0x198] sm:$0xff]
    %v1406 = vld [vmem:[#allocation2 + $0x1a0] sm:$0xff]
    %v1407 = vld [vmem:[#allocation2 + $0x1a8] sm:$0xff]
    %v1408 = vld [vmem:[#allocation2 + $0x1b0] sm:$0xff]
    %v1409 = vld [vmem:[#allocation2 + $0x1b8] sm:$0xff]
    %v1410 = vpack.c.bf16 %v1401, %v1400
    %1411 = vmatpush.bf16.msra.mxu0 %v721
    %1412 = vmatpush.bf16.msra.mxu0 %v717
    %1413 = vmatpush.bf16.msra.mxu0 %v713
    %1414 = vmatpush.bf16.msra.mxu0 %v709
    %1415 = vmatpush.bf16.msra.mxu0 %v705
    %1416 = vmatpush.bf16.msra.mxu0 %v701
    %1417 = vmatpush.bf16.msra.mxu0 %v697
    %1418 = vmatpush.bf16.msra.mxu0 %v693
    %1419 = vmatmul.bf16.gmra.mxu0 %v1410
    %v1420 = vpop.f32.mrf.mxu0
    %v1421 = vadd.f32 0.0, %v1420
    %v1422 = vpop.f32.mrf.mxu0
    %v1423 = vadd.f32 0.0, %v1422
    %1424 = vdwg.mxu0
    %1425 = vmatpush.bf16.msra.mxu0 %v722
    %1426 = vmatpush.bf16.msra.mxu0 %v718
    %1427 = vmatpush.bf16.msra.mxu0 %v714
    %1428 = vmatpush.bf16.msra.mxu0 %v710
    %1429 = vmatpush.bf16.msra.mxu0 %v706
    %1430 = vmatpush.bf16.msra.mxu0 %v702
    %1431 = vmatpush.bf16.msra.mxu0 %v698
    %1432 = vmatpush.bf16.msra.mxu0 %v694
    %1433 = vmatmul.bf16.gmra.mxu0 %v1410
    %v1434 = vpop.f32.mrf.mxu0
    %v1435 = vadd.f32 0.0, %v1434
    %v1436 = vpop.f32.mrf.mxu0
    %v1437 = vadd.f32 0.0, %v1436
    %1438 = vdwg.mxu0
    %1439 = vmatpush.bf16.msra.mxu0 %v723
    %1440 = vmatpush.bf16.msra.mxu0 %v719
    %1441 = vmatpush.bf16.msra.mxu0 %v715
    %1442 = vmatpush.bf16.msra.mxu0 %v711
    %1443 = vmatpush.bf16.msra.mxu0 %v707
    %1444 = vmatpush.bf16.msra.mxu0 %v703
    %1445 = vmatpush.bf16.msra.mxu0 %v699
    %1446 = vmatpush.bf16.msra.mxu0 %v695
    %1447 = vmatmul.bf16.gmra.mxu0 %v1410
    %v1448 = vpop.f32.mrf.mxu0
    %v1449 = vadd.f32 0.0, %v1448
    %v1450 = vpop.f32.mrf.mxu0
    %v1451 = vadd.f32 0.0, %v1450
    %1452 = vdwg.mxu0
    %1453 = vmatpush.bf16.msra.mxu0 %v724
    %1454 = vmatpush.bf16.msra.mxu0 %v720
    %1455 = vmatpush.bf16.msra.mxu0 %v716
    %1456 = vmatpush.bf16.msra.mxu0 %v712
    %1457 = vmatpush.bf16.msra.mxu0 %v708
    %1458 = vmatpush.bf16.msra.mxu0 %v704
    %1459 = vmatpush.bf16.msra.mxu0 %v700
    %1460 = vmatpush.bf16.msra.mxu0 %v696
    %1461 = vmatmul.bf16.gmra.mxu0 %v1410
    %v1462 = vpop.f32.mrf.mxu0
    %v1463 = vadd.f32 0.0, %v1462
    %v1464 = vpop.f32.mrf.mxu0
    %v1465 = vadd.f32 0.0, %v1464
    %1466 = vdwg.mxu0
    %v1467 = vadd.f32 %v1402, %v1421
    %v1468 = vadd.f32 %v1403, %v1435
    %v1469 = vadd.f32 %v1404, %v1449
    %v1470 = vadd.f32 %v1405, %v1463
    %v1471 = vadd.f32 %v1406, %v1423
    %v1472 = vadd.f32 %v1407, %v1437
    %v1473 = vadd.f32 %v1408, %v1451
    %v1474 = vadd.f32 %v1409, %v1465
    %v1475 = vmul.f32 %v1467, 0.5
    %v1476 = vmul.f32 %v1471, 0.5
    %v1477 = vtanh.pop %v1475
    %v1478 = vtanh.pop %v1476
    %v1479 = vmul.f32 %v1477, 0.5
    %v1480 = vmul.f32 %v1478, 0.5
    %v1481 = vadd.f32 %v1479, 0.5
    %v1482 = vadd.f32 %v1480, 0.5
    %v1483 = vmul.f32 %v1468, 0.5
    %v1484 = vmul.f32 %v1472, 0.5
    %v1485 = vtanh.pop %v1483
    %v1486 = vtanh.pop %v1484
    %v1487 = vmul.f32 %v1485, 0.5
    %v1488 = vmul.f32 %v1486, 0.5
    %v1489 = vadd.f32 %v1487, 0.5
    %v1490 = vadd.f32 %v1488, 0.5
    %v1491 = vtanh.pop %v1469
    %v1492 = vtanh.pop %v1473
    %v1493 = vmul.f32 %v1470, 0.5
    %v1494 = vmul.f32 %v1474, 0.5
    %v1495 = vtanh.pop %v1493
    %v1496 = vtanh.pop %v1494
    %v1497 = vmul.f32 %v1495, 0.5
    %v1498 = vmul.f32 %v1496, 0.5
    %v1499 = vadd.f32 %v1497, 0.5
    %v1500 = vadd.f32 %v1498, 0.5
    %v1501 = vmul.f32 %v1489, %v1396
    %v1502 = vmul.f32 %v1490, %v1397
    %v1503 = vmul.f32 %v1481, %v1491
    %v1504 = vmul.f32 %v1482, %v1492
    %v1505 = vadd.f32 %v1501, %v1503
    %v1506 = vadd.f32 %v1502, %v1504
    %v1507 = vtanh.pop %v1505
    %v1508 = vtanh.pop %v1506
    %v1509 = vmul.f32 %v1499, %v1507
    %v1510 = vmul.f32 %v1500, %v1508
    %v1511 = vld [vmem:[#allocation2 + $0x1c0] sm:$0xff]
    %v1512 = vld [vmem:[#allocation2 + $0x1c8] sm:$0xff]
    %v1513 = vld [vmem:[#allocation2 + $0x1d0] sm:$0xff]
    %v1514 = vld [vmem:[#allocation2 + $0x1d8] sm:$0xff]
    %v1515 = vld [vmem:[#allocation2 + $0x1e0] sm:$0xff]
    %v1516 = vld [vmem:[#allocation2 + $0x1e8] sm:$0xff]
    %v1517 = vld [vmem:[#allocation2 + $0x1f0] sm:$0xff]
    %v1518 = vld [vmem:[#allocation2 + $0x1f8] sm:$0xff]
    %v1519 = vpack.c.bf16 %v1510, %v1509
    %1520 = vmatpush.bf16.msra.mxu0 %v721
    %1521 = vmatpush.bf16.msra.mxu0 %v717
    %1522 = vmatpush.bf16.msra.mxu0 %v713
    %1523 = vmatpush.bf16.msra.mxu0 %v709
    %1524 = vmatpush.bf16.msra.mxu0 %v705
    %1525 = vmatpush.bf16.msra.mxu0 %v701
    %1526 = vmatpush.bf16.msra.mxu0 %v697
    %1527 = vmatpush.bf16.msra.mxu0 %v693
    %1528 = vmatmul.bf16.gmra.mxu0 %v1519
    %v1529 = vpop.f32.mrf.mxu0
    %v1530 = vadd.f32 0.0, %v1529
    %v1531 = vpop.f32.mrf.mxu0
    %v1532 = vadd.f32 0.0, %v1531
    %1533 = vdwg.mxu0
    %1534 = vmatpush.bf16.msra.mxu0 %v722
    %1535 = vmatpush.bf16.msra.mxu0 %v718
    %1536 = vmatpush.bf16.msra.mxu0 %v714
    %1537 = vmatpush.bf16.msra.mxu0 %v710
    %1538 = vmatpush.bf16.msra.mxu0 %v706
    %1539 = vmatpush.bf16.msra.mxu0 %v702
    %1540 = vmatpush.bf16.msra.mxu0 %v698
    %1541 = vmatpush.bf16.msra.mxu0 %v694
    %1542 = vmatmul.bf16.gmra.mxu0 %v1519
    %v1543 = vpop.f32.mrf.mxu0
    %v1544 = vadd.f32 0.0, %v1543
    %v1545 = vpop.f32.mrf.mxu0
    %v1546 = vadd.f32 0.0, %v1545
    %1547 = vdwg.mxu0
    %1548 = vmatpush.bf16.msra.mxu0 %v723
    %1549 = vmatpush.bf16.msra.mxu0 %v719
    %1550 = vmatpush.bf16.msra.mxu0 %v715
    %1551 = vmatpush.bf16.msra.mxu0 %v711
    %1552 = vmatpush.bf16.msra.mxu0 %v707
    %1553 = vmatpush.bf16.msra.mxu0 %v703
    %1554 = vmatpush.bf16.msra.mxu0 %v699
    %1555 = vmatpush.bf16.msra.mxu0 %v695
    %1556 = vmatmul.bf16.gmra.mxu0 %v1519
    %v1557 = vpop.f32.mrf.mxu0
    %v1558 = vadd.f32 0.0, %v1557
    %v1559 = vpop.f32.mrf.mxu0
    %v1560 = vadd.f32 0.0, %v1559
    %1561 = vdwg.mxu0
    %1562 = vmatpush.bf16.msra.mxu0 %v724
    %1563 = vmatpush.bf16.msra.mxu0 %v720
    %1564 = vmatpush.bf16.msra.mxu0 %v716
    %1565 = vmatpush.bf16.msra.mxu0 %v712
    %1566 = vmatpush.bf16.msra.mxu0 %v708
    %1567 = vmatpush.bf16.msra.mxu0 %v704
    %1568 = vmatpush.bf16.msra.mxu0 %v700
    %1569 = vmatpush.bf16.msra.mxu0 %v696
    %1570 = vmatmul.bf16.gmra.mxu0 %v1519
    %v1571 = vpop.f32.mrf.mxu0
    %v1572 = vadd.f32 0.0, %v1571
    %v1573 = vpop.f32.mrf.mxu0
    %v1574 = vadd.f32 0.0, %v1573
    %1575 = vdwg.mxu0
    %v1576 = vadd.f32 %v1511, %v1530
    %v1577 = vadd.f32 %v1512, %v1544
    %v1578 = vadd.f32 %v1513, %v1558
    %v1579 = vadd.f32 %v1514, %v1572
    %v1580 = vadd.f32 %v1515, %v1532
    %v1581 = vadd.f32 %v1516, %v1546
    %v1582 = vadd.f32 %v1517, %v1560
    %v1583 = vadd.f32 %v1518, %v1574
    %v1584 = vmul.f32 %v1576, 0.5
    %v1585 = vmul.f32 %v1580, 0.5
    %v1586 = vtanh.pop %v1584
    %v1587 = vtanh.pop %v1585
    %v1588 = vmul.f32 %v1586, 0.5
    %v1589 = vmul.f32 %v1587, 0.5
    %v1590 = vadd.f32 %v1588, 0.5
    %v1591 = vadd.f32 %v1589, 0.5
    %v1592 = vmul.f32 %v1577, 0.5
    %v1593 = vmul.f32 %v1581, 0.5
    %v1594 = vtanh.pop %v1592
    %v1595 = vtanh.pop %v1593
    %v1596 = vmul.f32 %v1594, 0.5
    %v1597 = vmul.f32 %v1595, 0.5
    %v1598 = vadd.f32 %v1596, 0.5
    %v1599 = vadd.f32 %v1597, 0.5
    %v1600 = vtanh.pop %v1578
    %v1601 = vtanh.pop %v1582
    %v1602 = vmul.f32 %v1579, 0.5
    %v1603 = vmul.f32 %v1583, 0.5
    %v1604 = vtanh.pop %v1602
    %v1605 = vtanh.pop %v1603
    %v1606 = vmul.f32 %v1604, 0.5
    %v1607 = vmul.f32 %v1605, 0.5
    %v1608 = vadd.f32 %v1606, 0.5
    %v1609 = vadd.f32 %v1607, 0.5
    %v1610 = vmul.f32 %v1598, %v1505
    %v1611 = vmul.f32 %v1599, %v1506
    %v1612 = vmul.f32 %v1590, %v1600
    %v1613 = vmul.f32 %v1591, %v1601
    %v1614 = vadd.f32 %v1610, %v1612
    %v1615 = vadd.f32 %v1611, %v1613
    %v1616 = vtanh.pop %v1614
    %v1617 = vtanh.pop %v1615
    %v1618 = vmul.f32 %v1608, %v1616
    %v1619 = vmul.f32 %v1609, %v1617
    %v1620 = vld [vmem:[%s3] sm:$0x1]
    %v1622 = vperm.slane %v1620, 0
    %v1624 = vmul.f32 %v1618, %v1622
    %v1625 = vmul.f32 %v1619, %v1622
    %1626 = vadd.xlane.f32.xlu0 %v1624
    %v1627 = vpop.xlane.xlu0 %1626
    %1628 = vadd.xlane.f32.xlu0 %v1625
    %v1629 = vpop.xlane.xlu0 %1628
    %s1630 = sld [smem:[#allocation3]]
    %v1631 = vstv %s1630
    %v1632 = vadd.f32 %v1627, %v1631
    %v1633 = vadd.f32 %v1629, %v1631
    %1634 = vst [vmem:[#allocation9] sm:$0xff] %v1632
    %1635 = vst [vmem:[#allocation9 + $0x8] sm:$0xff] %v1633
    // Predicated region
    $region30: #{tpu_custom_call.1} parent=1 // pred_check
      _
    $region31: #{tpu_custom_call.1} parent=1 // pred_check_branch
      %1637 = sbr.rel (0) target = $region33
    $region32: #{tpu_custom_call.1} parent=1 // pred_region
      %1639 = vsyncadd [#allocation6], 0
      %s1640 = sshll.u32 [#allocation9], 4
      %s1641 = int_to_ptr.vmem [resolvable:$true] %s1640
      %s1642 = sshll.u32 %s5, 4
      %s1643 = int_to_ptr.hbm [resolvable:$true] %s1642
      %1648 = dma.vmem_to_hbm [thread:$0]  %s1641, 256, %s1643, [#allocation6], 128, 128, 8
    $region33: #{tpu_custom_call.1} parent=1 // pred_fallthru
      _
    // Predicated region
    $region34: #{tpu_custom_call.1} parent=1 // pred_check
      _
    $region35: #{tpu_custom_call.1} parent=1 // pred_check_branch
      %1650 = sbr.rel (0) target = $region37
    $region36: #{tpu_custom_call.1} parent=1 // pred_region
      %1652 = dma.done [#allocation6], 256
    $region37: #{tpu_custom_call.1} parent=1 // pred_fallthru
      _
    %1653 = vsyncpa [#allocation5], 1
    %1654 = vsyncpa [#allocation8], 1
    %1655 = vsyncpa [#allocation6], 1

</llo_original>
